<compile_context>
chip_gen: v6e
topology: v6e:2x2x1
jax: 0.10.0
libtpu: 0.0.40
codegen_flags: <defaults>
</compile_context>

<pallas_src>
import functools

import jax
import jax.numpy as jnp
from jax.experimental import pallas as pl
from jax.experimental.pallas import tpu as pltpu

_LANE = 128


def _round_up(v, m):
    return (v + m - 1) // m * m


# ---------------------------------------------------------------------------
# Phase 1 kernel: per row tile
#   H1_tile = relu(A_tile @ X @ W1_l + X_tile @ W1_r + b1) * mask_tile
#   p_l_tile = H1_tile @ W2_l   (bf16, aggregated in phase 2)
#   p_r_tile = H1_tile @ W2_r   (f32)
# ---------------------------------------------------------------------------
def _sage_phase1_kernel(a_ref, x_ref, w1_ref, b1_ref, mask_ref, w2_ref,
                        pl_ref, pr_ref, *, fin: int, d2p: int, tm: int):
    row0 = pl.multiple_of(pl.program_id(0) * tm, tm)
    x_full = x_ref[...]                                    # [Np, Fin]  bf16
    x_tile = x_ref[pl.ds(row0, tm), :]                     # [TM, Fin]  bf16

    # Mean aggregation for this row tile.
    agg1 = jnp.dot(a_ref[...], x_full,
                   preferred_element_type=jnp.float32)     # [TM, Fin]  f32

    # Two dots on static sublane slices of W1 (no lane-axis concat needed).
    h1 = (jnp.dot(agg1.astype(jnp.bfloat16), w1_ref[:fin, :],
                  preferred_element_type=jnp.float32)
          + jnp.dot(x_tile, w1_ref[fin:, :],
                    preferred_element_type=jnp.float32)
          + b1_ref[...])
    # relu + pre-scaled dropout mask (mask values are 0 or 1/(1-p)), f32 epilogue.
    h1 = jnp.maximum(h1, 0.0) * mask_ref[...].astype(jnp.float32)
    h1 = h1.astype(jnp.bfloat16)

    # Fused layer-2 projections: [p_l | p_r] = H1 @ [W2_l | W2_r].
    p2 = jnp.dot(h1, w2_ref[...], preferred_element_type=jnp.float32)
    pl_ref[...] = p2[:, :d2p].astype(pl_ref.dtype)
    pr_ref[...] = p2[:, d2p:].astype(pr_ref.dtype)


# ---------------------------------------------------------------------------
# Phase 2 kernel: per row tile   out_tile = A_tile @ P_l + P_r_tile + b2
# ---------------------------------------------------------------------------
def _sage_phase2_kernel(a_ref, plft_ref, pr_ref, b2_ref, out_ref):
    out = (jnp.dot(a_ref[...], plft_ref[...],
                   preferred_element_type=jnp.float32)
           + pr_ref[...] + b2_ref[...])
    out_ref[...] = out.astype(out_ref.dtype)


def mean_adjacency(edge_index, num_nodes):
    """Dense row-normalized adjacency: A[i, j] = (#edges j->i) / in_degree(i)."""
    src = edge_index[0]
    dst = edge_index[1]
    adj = jnp.zeros((num_nodes, num_nodes), jnp.float32).at[dst, src].add(1.0)
    deg = adj.sum(axis=1, keepdims=True)
    return adj / jnp.maximum(deg, 1.0)


def init_sage_params(key, in_dim, out_dims):
    """Synthetic parameters matching SAGEConv shapes, stored pre-transposed."""
    d1, d2 = out_dims['out_dim1'], out_dims['out_dim2']
    ks = jax.random.split(key, 6)

    def lin(k, fan_in, fan_out):
        scale = 1.0 / jnp.sqrt(jnp.float32(fan_in))
        return jax.random.uniform(k, (fan_in, fan_out), jnp.float32, -scale, scale)

    return {
        "w1_l": lin(ks[0], in_dim, d1),
        "w1_r": lin(ks[1], in_dim, d1),
        "b1": jax.random.uniform(ks[2], (1, d1), jnp.float32, -0.1, 0.1),
        "w2_l": lin(ks[3], d1, d2),
        "w2_r": lin(ks[4], d1, d2),
        "b2": jax.random.uniform(ks[5], (1, d2), jnp.float32, -0.1, 0.1),
    }


def sage_forward(params, x, edge_index, keep_mask, dropout_p=0.2, tm=128):
    """Two-phase tiled forward. keep_mask is a {0,1} array of shape [N, out_dim1]."""
    n, fin = x.shape
    d1 = params["w1_l"].shape[1]
    d2 = params["w2_l"].shape[1]
    d1p = _round_up(d1, _LANE)
    d2p = _round_up(d2, _LANE)

    tm = min(tm, _round_up(n, 16))          # row-tile size (bf16 sublane multiple)
    np_ = _round_up(n, tm)                  # padded node count
    grid = (np_ // tm,)

    # --- operand prep (padded, bf16 where it feeds the MXU) -----------------
    a = mean_adjacency(edge_index, n)
    a = jnp.pad(a, ((0, np_ - n), (0, np_ - n))).astype(jnp.bfloat16)
    x_bf = jnp.pad(x, ((0, np_ - n), (0, 0))).astype(jnp.bfloat16)

    w1 = jnp.concatenate([params["w1_l"], params["w1_r"]], axis=0)      # [2*Fin, d1]
    w1 = jnp.pad(w1, ((0, 0), (0, d1p - d1))).astype(jnp.bfloat16)
    b1 = jnp.pad(params["b1"], ((0, 0), (0, d1p - d1)))                 # f32

    w2_l = jnp.pad(params["w2_l"], ((0, d1p - d1), (0, d2p - d2)))
    w2_r = jnp.pad(params["w2_r"], ((0, d1p - d1), (0, d2p - d2)))
    w2 = jnp.concatenate([w2_l, w2_r], axis=1).astype(jnp.bfloat16)     # [d1p, 2*d2p]
    b2 = jnp.pad(params["b2"], ((0, 0), (0, d2p - d2)))                 # f32

    scale = 1.0 / (1.0 - dropout_p) if dropout_p > 0.0 else 1.0
    mask = jnp.pad(keep_mask.astype(jnp.float32) * scale,
                   ((0, np_ - n), (0, d1p - d1))).astype(jnp.bfloat16)

    def _bytes(*arrs):
        return int(sum(arr.size * arr.dtype.itemsize for arr in arrs))

    def _vmem_limit(per_step_bytes):
        # Double-buffered tiles + 2x safety margin, floored / capped for v7x.
        return int(min(64 << 20, max(4 * per_step_bytes, 8 << 20)))

    # --------------------------- Phase 1 ------------------------------------
    p1_step = (tm * np_ * 2 + np_ * fin * 2 + w1.size * 2 + d1p * 4
               + tm * d1p * 2 + w2.size * 2 + tm * d2p * 2 + tm * d2p * 4)
    p1_flops = (2 * np_ * np_ * fin + 2 * np_ * (2 * fin) * d1p
                + 2 * np_ * d1p * (2 * d2p))
    p1_bytes = _bytes(a, x_bf, w1, b1, mask, w2) + np_ * d2p * (2 + 4)

    p_l, p_r = pl.pallas_call(
        functools.partial(_sage_phase1_kernel, fin=fin, d2p=d2p, tm=tm),
        out_shape=(jax.ShapeDtypeStruct((np_, d2p), jnp.bfloat16),
                   jax.ShapeDtypeStruct((np_, d2p), jnp.float32)),
        grid_spec=pltpu.PrefetchScalarGridSpec(
            num_scalar_prefetch=0,
            grid=grid,
            in_specs=[
                pl.BlockSpec((tm, np_), lambda i: (i, 0)),        # A row tile
                pl.BlockSpec((np_, fin), lambda i: (0, 0)),       # X (full)
                pl.BlockSpec((2 * fin, d1p), lambda i: (0, 0)),   # [W1_l; W1_r]
                pl.BlockSpec((1, d1p), lambda i: (0, 0)),         # b1
                pl.BlockSpec((tm, d1p), lambda i: (i, 0)),        # dropout mask tile
                pl.BlockSpec((d1p, 2 * d2p), lambda i: (0, 0)),   # [W2_l | W2_r]
            ],
            out_specs=[
                pl.BlockSpec((tm, d2p), lambda i: (i, 0)),        # p_l (bf16)
                pl.BlockSpec((tm, d2p), lambda i: (i, 0)),        # p_r (f32)
            ]),
        compiler_params=pltpu.CompilerParams(
            dimension_semantics=(pltpu.PARALLEL,),
            vmem_limit_bytes=_vmem_limit(p1_step)),
        cost_estimate=pl.CostEstimate(flops=p1_flops, transcendentals=0,
                                      bytes_accessed=p1_bytes),
    )(a, x_bf, w1, b1, mask, w2)

    # --------------------------- Phase 2 ------------------------------------
    p2_step = (tm * np_ * 2 + np_ * d2p * 2 + tm * d2p * 4 + d2p * 4
               + tm * d2p * 2)
    p2_flops = 2 * np_ * np_ * d2p
    p2_bytes = _bytes(a, p_l, p_r, b2) + np_ * d2p * 2

    out = pl.pallas_call(
        _sage_phase2_kernel,
        out_shape=jax.ShapeDtypeStruct((np_, d2p), jnp.bfloat16),
        grid_spec=pltpu.PrefetchScalarGridSpec(
            num_scalar_prefetch=0,
            grid=grid,
            in_specs=[
                pl.BlockSpec((tm, np_), lambda i: (i, 0)),        # A row tile
                pl.BlockSpec((np_, d2p), lambda i: (0, 0)),       # p_l (full)
                pl.BlockSpec((tm, d2p), lambda i: (i, 0)),        # p_r tile
                pl.BlockSpec((1, d2p), lambda i: (0, 0)),         # b2
            ],
            out_specs=pl.BlockSpec((tm, d2p), lambda i: (i, 0))),
        compiler_params=pltpu.CompilerParams(
            dimension_semantics=(pltpu.PARALLEL,),
            vmem_limit_bytes=_vmem_limit(p2_step)),
        cost_estimate=pl.CostEstimate(flops=p2_flops, transcendentals=0,
                                      bytes_accessed=p2_bytes),
    )(a, p_l, p_r, b2)

    return out[:n, :d2].astype(jnp.float32)


if __name__ == "__main__":
    key = jax.random.PRNGKey(0)
    k_x, k_e, k_p, k_d = jax.random.split(key, 4)

    N, E = 256, 1024
    in_dim = 32
    out_dims = {"out_dim1": 32, "out_dim2": 16}
    dropout_p = 0.2

    x = jax.random.normal(k_x, (N, in_dim), dtype=jnp.float32)
    edge_index = jax.random.randint(k_e, (2, E), 0, N, dtype=jnp.int32)
    params = init_sage_params(k_p, in_dim, out_dims)
    keep_mask = jax.random.bernoulli(k_d, 1.0 - dropout_p,
                                     (N, out_dims["out_dim1"]))

    out = sage_forward(params, x, edge_index, keep_mask, dropout_p=dropout_p)
    out = jax.block_until_ready(out)

    # Pure-JAX f32 reference (same math, same dropout mask).
    a_ref = mean_adjacency(edge_index, N)
    h1_ref = (a_ref @ x) @ params["w1_l"] + x @ params["w1_r"] + params["b1"]
    h1_ref = (jnp.maximum(h1_ref, 0.0)
              * keep_mask.astype(jnp.float32) / (1.0 - dropout_p))
    ref = (a_ref @ h1_ref) @ params["w2_l"] + h1_ref @ params["w2_r"] + params["b2"]

    assert out.shape == (N, out_dims["out_dim2"])
    assert bool(jnp.all(jnp.isfinite(out)))
    max_err = float(jnp.max(jnp.abs(out - ref)))
    assert max_err < 0.15, f"max abs err vs f32 reference: {max_err}"
    print("KERNEL_OK")
</pallas_src>

<mosaic_0001>
module attributes {stable_mosaic.version = 11 : i64} {
  func.func @_sage_phase1_kernel(%arg0: i32, %arg1: memref<128x256xbf16, #tpu.memory_space<vmem>>, %arg2: memref<256x32xbf16, #tpu.memory_space<vmem>>, %arg3: memref<64x128xbf16, #tpu.memory_space<vmem>>, %arg4: memref<1x128xf32, #tpu.memory_space<vmem>>, %arg5: memref<128x128xbf16, #tpu.memory_space<vmem>>, %arg6: memref<128x256xbf16, #tpu.memory_space<vmem>>, %arg7: memref<128x128xbf16, #tpu.memory_space<vmem>>, %arg8: memref<128x128xf32, #tpu.memory_space<vmem>>) attributes {dimension_semantics = [#tpu.dimension_semantics<parallel>], iteration_bounds = array<i64: 2>, scalar_prefetch = 0 : i64, scratch_operands = 0 : i64, tpu.core_type = #tpu.core_type<tc>, window_params = [{transform_indices = @transform_0, window_bounds = array<i64: 128, 256>}, {pipeline_mode = #tpu.pipeline_mode<synchronous>, transform_indices = @transform_1, window_bounds = array<i64: 256, 32>}, {pipeline_mode = #tpu.pipeline_mode<synchronous>, transform_indices = @transform_2, window_bounds = array<i64: 64, 128>}, {pipeline_mode = #tpu.pipeline_mode<synchronous>, transform_indices = @transform_3, window_bounds = array<i64: 1, 128>}, {transform_indices = @transform_4, window_bounds = array<i64: 128, 128>}, {pipeline_mode = #tpu.pipeline_mode<synchronous>, transform_indices = @transform_5, window_bounds = array<i64: 128, 256>}, {transform_indices = @transform_6, window_bounds = array<i64: 128, 128>}, {transform_indices = @transform_7, window_bounds = array<i64: 128, 128>}]} {
    %c128_i32 = arith.constant 128 : i32
    %0 = arith.muli %arg0, %c128_i32 : i32
    %1 = tpu.assume_multiple %0, 128 : i32
    %c0 = arith.constant 0 : index
    %c0_0 = arith.constant 0 : index
    %2 = vector.load %arg2[%c0, %c0_0] : memref<256x32xbf16, #tpu.memory_space<vmem>>, vector<256x32xbf16>
    %3 = arith.index_cast %1 : i32 to index
    %c0_1 = arith.constant 0 : index
    %4 = vector.load %arg2[%3, %c0_1] : memref<256x32xbf16, #tpu.memory_space<vmem>>, vector<128x32xbf16>
    %c0_2 = arith.constant 0 : index
    %c0_3 = arith.constant 0 : index
    %5 = vector.load %arg1[%c0_2, %c0_3] : memref<128x256xbf16, #tpu.memory_space<vmem>>, vector<128x256xbf16>
    %cst = arith.constant dense<0.000000e+00> : vector<128x32xf32>
    %6 = tpu.matmul %5, %2, %cst {dimension_numbers = #tpu.dot_dimension_numbers<[1], [0], [0], [1], [0, 0, 1, 1], [], []>} : vector<128x256xbf16>, vector<256x32xbf16>, vector<128x32xf32> -> vector<128x32xf32>
    %7 = arith.truncf %6 : vector<128x32xf32> to vector<128x32xbf16>
    %c0_4 = arith.constant 0 : index
    %c0_5 = arith.constant 0 : index
    %8 = vector.load %arg3[%c0_4, %c0_5] : memref<64x128xbf16, #tpu.memory_space<vmem>>, vector<32x128xbf16>
    %cst_6 = arith.constant dense<0.000000e+00> : vector<128x128xf32>
    %9 = tpu.matmul %7, %8, %cst_6 {dimension_numbers = #tpu.dot_dimension_numbers<[1], [0], [0], [1], [0, 0, 1, 1], [], []>} : vector<128x32xbf16>, vector<32x128xbf16>, vector<128x128xf32> -> vector<128x128xf32>
    %c32 = arith.constant 32 : index
    %c0_7 = arith.constant 0 : index
    %10 = vector.load %arg3[%c32, %c0_7] : memref<64x128xbf16, #tpu.memory_space<vmem>>, vector<32x128xbf16>
    %cst_8 = arith.constant dense<0.000000e+00> : vector<128x128xf32>
    %11 = tpu.matmul %4, %10, %cst_8 {dimension_numbers = #tpu.dot_dimension_numbers<[1], [0], [0], [1], [0, 0, 1, 1], [], []>} : vector<128x32xbf16>, vector<32x128xbf16>, vector<128x128xf32> -> vector<128x128xf32>
    %12 = arith.addf %9, %11 : vector<128x128xf32>
    %c0_9 = arith.constant 0 : index
    %c0_10 = arith.constant 0 : index
    %13 = vector.load %arg4[%c0_9, %c0_10] : memref<1x128xf32, #tpu.memory_space<vmem>>, vector<1x128xf32>
    %14 = vector.broadcast %13 : vector<1x128xf32> to vector<128x128xf32>
    %15 = arith.addf %12, %14 : vector<128x128xf32>
    %cst_11 = arith.constant 0.000000e+00 : f32
    %16 = vector.broadcast %cst_11 : f32 to vector<128x128xf32>
    %17 = arith.maximumf %15, %16 : vector<128x128xf32>
    %c0_12 = arith.constant 0 : index
    %c0_13 = arith.constant 0 : index
    %18 = vector.load %arg5[%c0_12, %c0_13] : memref<128x128xbf16, #tpu.memory_space<vmem>>, vector<128x128xbf16>
    %19 = arith.extf %18 : vector<128x128xbf16> to vector<128x128xf32>
    %20 = arith.mulf %17, %19 : vector<128x128xf32>
    %21 = arith.truncf %20 : vector<128x128xf32> to vector<128x128xbf16>
    %c0_14 = arith.constant 0 : index
    %c0_15 = arith.constant 0 : index
    %22 = vector.load %arg6[%c0_14, %c0_15] : memref<128x256xbf16, #tpu.memory_space<vmem>>, vector<128x256xbf16>
    %cst_16 = arith.constant dense<0.000000e+00> : vector<128x256xf32>
    %23 = tpu.matmul %21, %22, %cst_16 {dimension_numbers = #tpu.dot_dimension_numbers<[1], [0], [0], [1], [0, 0, 1, 1], [], []>} : vector<128x128xbf16>, vector<128x256xbf16>, vector<128x256xf32> -> vector<128x256xf32>
    %24 = vector.extract_strided_slice %23 {offsets = [0, 0], sizes = [128, 128], strides = [1, 1]} : vector<128x256xf32> to vector<128x128xf32>
    %25 = arith.truncf %24 : vector<128x128xf32> to vector<128x128xbf16>
    %c0_17 = arith.constant 0 : index
    %c0_18 = arith.constant 0 : index
    %26 = vector.load %arg7[%c0_17, %c0_18] : memref<128x128xbf16, #tpu.memory_space<vmem>>, vector<128x128xbf16>
    tpu.vector_store %arg7[%c0_17, %c0_18], %25 {strides = array<i32>} : memref<128x128xbf16, #tpu.memory_space<vmem>>, vector<128x128xbf16>,
    %27 = vector.extract_strided_slice %23 {offsets = [0, 128], sizes = [128, 128], strides = [1, 1]} : vector<128x256xf32> to vector<128x128xf32>
    %c0_19 = arith.constant 0 : index
    %c0_20 = arith.constant 0 : index
    %28 = vector.load %arg8[%c0_19, %c0_20] : memref<128x128xf32, #tpu.memory_space<vmem>>, vector<128x128xf32>
    tpu.vector_store %arg8[%c0_19, %c0_20], %27 {strides = array<i32>} : memref<128x128xf32, #tpu.memory_space<vmem>>, vector<128x128xf32>,
    return
  }
  func.func @transform_0(%arg0: i32) -> (i32, i32) {
    %c0_i32 = arith.constant 0 : i32
    %c0_i32_0 = arith.constant 0 : i32
    return %arg0, %c0_i32 : i32, i32
  }
  func.func @transform_1(%arg0: i32) -> (i32, i32) {
    %c0_i32 = arith.constant 0 : i32
    %c0_i32_0 = arith.constant 0 : i32
    %c0_i32_1 = arith.constant 0 : i32
    return %c0_i32, %c0_i32_0 : i32, i32
  }
  func.func @transform_2(%arg0: i32) -> (i32, i32) {
    %c0_i32 = arith.constant 0 : i32
    %c0_i32_0 = arith.constant 0 : i32
    %c0_i32_1 = arith.constant 0 : i32
    return %c0_i32, %c0_i32_0 : i32, i32
  }
  func.func @transform_3(%arg0: i32) -> (i32, i32) {
    %c0_i32 = arith.constant 0 : i32
    %c0_i32_0 = arith.constant 0 : i32
    %c0_i32_1 = arith.constant 0 : i32
    return %c0_i32, %c0_i32_0 : i32, i32
  }
  func.func @transform_4(%arg0: i32) -> (i32, i32) {
    %c0_i32 = arith.constant 0 : i32
    %c0_i32_0 = arith.constant 0 : i32
    return %arg0, %c0_i32 : i32, i32
  }
  func.func @transform_5(%arg0: i32) -> (i32, i32) {
    %c0_i32 = arith.constant 0 : i32
    %c0_i32_0 = arith.constant 0 : i32
    %c0_i32_1 = arith.constant 0 : i32
    return %c0_i32, %c0_i32_0 : i32, i32
  }
  func.func @transform_6(%arg0: i32) -> (i32, i32) {
    %c0_i32 = arith.constant 0 : i32
    %c0_i32_0 = arith.constant 0 : i32
    return %arg0, %c0_i32 : i32, i32
  }
  func.func @transform_7(%arg0: i32) -> (i32, i32) {
    %c0_i32 = arith.constant 0 : i32
    %c0_i32_0 = arith.constant 0 : i32
    return %arg0, %c0_i32 : i32, i32
  }
}

</mosaic_0001>

<llo_original>
// kernel: tpu_custom_call.1
$region0: #{tpu_custom_call.1}
  #allocation0 [shape = 'u32[]', space=smem, size = 0x4, offset = 0x4, fixed_abs, tag = 'smem constant byte address 0x4 - core index']
  #allocation1 [shape = 'u32[144,128]{1,0:T(1,128)}', space=vmem, size = 0x12000, scoped, tag = 'internal scratch']
  %s0 = inlined_call_operand.hbm [shape: bf16[256,256], index: 0, kind: input, shape index: {}]
  %s1 = inlined_call_operand.vmem [shape: bf16[256,32], index: 1, kind: input, shape index: {}]
  %s2 = inlined_call_operand.vmem [shape: bf16[64,128], index: 2, kind: input, shape index: {}]
  %s3 = inlined_call_operand.vmem [shape: f32[1,128], index: 3, kind: input, shape index: {}]
  %s4 = inlined_call_operand.vmem [shape: bf16[256,128], index: 4, kind: input, shape index: {}]
  %s5 = inlined_call_operand.hbm [shape: bf16[128,256], index: 5, kind: input, shape index: {}]
  %s6 = inlined_call_operand.hbm [shape: bf16[256,128], index: 6, kind: output, shape index: {0}]
  %s7 = inlined_call_operand.hbm [shape: f32[256,128], index: 7, kind: output, shape index: {1}]
  %8 = xla_tuple %s6, %s7
  %s9 = sld [smem:[#allocation0]]
  $region73: #{tpu_custom_call.1} parent=0
    _
  %s11 = ssub.s32 1, %s9
  %s12 = scalar_select 0, %s11, %s9
  $region1: #{tpu_custom_call.1} parent=0
    #allocation2 [shape = 'u8[131072]{0}', space=vmem, size = 0x20000, scoped, tag = 'input window, operand 0']
    #allocation3 [shape = 's32[2]{0}', space=sflag, size = 0x8, scoped, tag = 'scoped memory for tpu_custom_call.1']
    #allocation4 [shape = 's32[2]{0}', space=sflag, size = 0x8, scoped, tag = 'scoped memory for tpu_custom_call.1']
    #allocation5 [shape = 'u8[65536]{0}', space=vmem, size = 0x10000, scoped, tag = 'input window, operand 5, single buffered']
    #allocation6 [shape = 's32[1]{0}', space=sflag, size = 0x4, scoped, tag = 'scoped memory for tpu_custom_call.1']
    #allocation7 [shape = 'u8[65536]{0}', space=vmem, size = 0x10000, scoped, tag = 'output window, operand 0']
    #allocation8 [shape = 'u8[131072]{0}', space=vmem, size = 0x20000, scoped, tag = 'output window, operand 1']
    #allocation9 [shape = 's32[2]{0}', space=sflag, size = 0x8, scoped, tag = 'scoped memory for tpu_custom_call.1']
    %13 = vsyncpa [#allocation3], 0
    %s14 = scalar_lea.sflag [#allocation3], 1
    %15 = vsyncpa %s14, 0
    %16 = vsyncpa [#allocation6], 0
    %17 = vsyncpa [#allocation4], 0
    %s18 = scalar_lea.sflag [#allocation4], 1
    %19 = vsyncpa %s18, 0
    %20 = vsyncpa [#allocation9], 0
    %s21 = scalar_lea.sflag [#allocation9], 1
    %22 = vsyncpa %s21, 0
    loop: start=0, step=1, limit=4
    $region2: #{tpu_custom_call.1} parent=1 // loop_pre_header
      _
    $region3: #{tpu_custom_call.1} parent=1 // loop_header
      %s24 = sphi 0, %s28
      %p25 = scmp.ge.s32.totalorder %s24, 4
      %s34 = sphi 0, %s36
      %s37 = sphi 0, %s34
      %s38 = sphi 0, %s37
      %s54 = sphi 0, %s38
      %s58 = sphi 0, %s58
      %s60 = sphi 0, %s58
      %s61 = sphi 0, %s60
      %s75 = sphi 0, %s61
      %s79 = sphi 0, %s79
      %s81 = sphi 0, %s79
      %s82 = sphi 0, %s81
      %s96 = sphi 0, %s82
      %s100 = sphi 0, %s100
      %s102 = sphi 0, %s100
      %s103 = sphi 0, %s102
      %s117 = sphi 0, %s103
      %s123 = sphi 0, %s125
      %s126 = sphi 0, %s123
      %s127 = sphi 0, %s126
      %s143 = sphi 0, %s127
      %s147 = sphi 0, %s147
      %s149 = sphi 0, %s147
      %s150 = sphi 0, %s149
      %s164 = sphi 0, %s150
      %s170 = sphi 0, %s172
      %s173 = sphi 0, %s170
      %s174 = sphi 0, %s173
      %s190 = sphi 0, %s174
      %s196 = sphi 0, %s198
      %s199 = sphi 0, %s196
      %s200 = sphi 0, %s199
      %s216 = sphi 0, %s200
    $region4: #{tpu_custom_call.1} parent=1 // loop_header_branch
      %27 = sbr.rel (%p25) target = $region8
    $region5: #{tpu_custom_call.1} parent=1 // loop_body
      %s29 = ssub.s32 %s24, 1
      %s30 = ssub.s32 %s24, 2
      %s31 = sadd.s32 %s24, 1
      %s32 = ssub.s32 %s24, %s31
      %p33 = scmp.eq.s32.totalorder %s32, 0
      %s35 = sadd.s32 %s34, 1
      %s36 = scalar_select %p33, %s34, %s35
      %p39 = pneg %p33
      %p40 = scmp.eq.s32.totalorder %s24, 1
      %p41 = por %p39, %p40
      %p42 = scmp.ne.s32.totalorder %s34, %s37
      %p43 = scmp.eq.s32.totalorder %s24, 0
      %p44 = por %p42, %p43
      %p45 = scmp.ne.s32.totalorder %s34, %s37
      %p46 = scmp.eq.s32.totalorder %s29, 1
      %p47 = por %p45, %p46
      %p48 = scmp.ne.s32.totalorder %s37, %s38
      %p49 = scmp.eq.s32.totalorder %s29, 0
      %p50 = por %p48, %p49
      %p51 = scmp.ne.s32.totalorder %s37, %s38
      %p52 = scmp.eq.s32.totalorder %s30, 1
      %p53 = por %p51, %p52
      %p55 = scmp.ne.s32.totalorder %s38, %s54
      %p56 = scmp.eq.s32.totalorder %s30, 0
      %p57 = por %p55, %p56
      %s59 = sadd.s32 %s58, 1
      %p62 = scmp.eq.s32.totalorder %s24, 1
      %p63 = scmp.ne.s32.totalorder %s58, %s60
      %p64 = scmp.eq.s32.totalorder %s24, 0
      %p65 = por %p63, %p64
      %p66 = scmp.ne.s32.totalorder %s58, %s60
      %p67 = scmp.eq.s32.totalorder %s29, 1
      %p68 = por %p66, %p67
      %p69 = scmp.ne.s32.totalorder %s60, %s61
      %p70 = scmp.eq.s32.totalorder %s29, 0
      %p71 = por %p69, %p70
      %p72 = scmp.ne.s32.totalorder %s60, %s61
      %p73 = scmp.eq.s32.totalorder %s30, 1
      %p74 = por %p72, %p73
      %p76 = scmp.ne.s32.totalorder %s61, %s75
      %p77 = scmp.eq.s32.totalorder %s30, 0
      %p78 = por %p76, %p77
      %s80 = sadd.s32 %s79, 1
      %p83 = scmp.eq.s32.totalorder %s24, 1
      %p84 = scmp.ne.s32.totalorder %s79, %s81
      %p85 = scmp.eq.s32.totalorder %s24, 0
      %p86 = por %p84, %p85
      %p87 = scmp.ne.s32.totalorder %s79, %s81
      %p88 = scmp.eq.s32.totalorder %s29, 1
      %p89 = por %p87, %p88
      %p90 = scmp.ne.s32.totalorder %s81, %s82
      %p91 = scmp.eq.s32.totalorder %s29, 0
      %p92 = por %p90, %p91
      %p93 = scmp.ne.s32.totalorder %s81, %s82
      %p94 = scmp.eq.s32.totalorder %s30, 1
      %p95 = por %p93, %p94
      %p97 = scmp.ne.s32.totalorder %s82, %s96
      %p98 = scmp.eq.s32.totalorder %s30, 0
      %p99 = por %p97, %p98
      %s101 = sadd.s32 %s100, 1
      %p104 = scmp.eq.s32.totalorder %s24, 1
      %p105 = scmp.ne.s32.totalorder %s100, %s102
      %p106 = scmp.eq.s32.totalorder %s24, 0
      %p107 = por %p105, %p106
      %p108 = scmp.ne.s32.totalorder %s100, %s102
      %p109 = scmp.eq.s32.totalorder %s29, 1
      %p110 = por %p108, %p109
      %p111 = scmp.ne.s32.totalorder %s102, %s103
      %p112 = scmp.eq.s32.totalorder %s29, 0
      %p113 = por %p111, %p112
      %p114 = scmp.ne.s32.totalorder %s102, %s103
      %p115 = scmp.eq.s32.totalorder %s30, 1
      %p116 = por %p114, %p115
      %p118 = scmp.ne.s32.totalorder %s103, %s117
      %p119 = scmp.eq.s32.totalorder %s30, 0
      %p120 = por %p118, %p119
      %s121 = ssub.s32 %s24, %s31
      %p122 = scmp.eq.s32.totalorder %s121, 0
      %s124 = sadd.s32 %s123, 1
      %s125 = scalar_select %p122, %s123, %s124
      %p128 = pneg %p122
      %p129 = scmp.eq.s32.totalorder %s24, 1
      %p130 = por %p128, %p129
      %p131 = scmp.ne.s32.totalorder %s123, %s126
      %p132 = scmp.eq.s32.totalorder %s24, 0
      %p133 = por %p131, %p132
      %p134 = scmp.ne.s32.totalorder %s123, %s126
      %p135 = scmp.eq.s32.totalorder %s29, 1
      %p136 = por %p134, %p135
      %p137 = scmp.ne.s32.totalorder %s126, %s127
      %p138 = scmp.eq.s32.totalorder %s29, 0
      %p139 = por %p137, %p138
      %p140 = scmp.ne.s32.totalorder %s126, %s127
      %p141 = scmp.eq.s32.totalorder %s30, 1
      %p142 = por %p140, %p141
      %p144 = scmp.ne.s32.totalorder %s127, %s143
      %p145 = scmp.eq.s32.totalorder %s30, 0
      %p146 = por %p144, %p145
      %s148 = sadd.s32 %s147, 1
      %p151 = scmp.eq.s32.totalorder %s24, 1
      %p152 = scmp.ne.s32.totalorder %s147, %s149
      %p153 = scmp.eq.s32.totalorder %s24, 0
      %p154 = por %p152, %p153
      %p155 = scmp.ne.s32.totalorder %s147, %s149
      %p156 = scmp.eq.s32.totalorder %s29, 1
      %p157 = por %p155, %p156
      %p158 = scmp.ne.s32.totalorder %s149, %s150
      %p159 = scmp.eq.s32.totalorder %s29, 0
      %p160 = por %p158, %p159
      %p161 = scmp.ne.s32.totalorder %s149, %s150
      %p162 = scmp.eq.s32.totalorder %s30, 1
      %p163 = por %p161, %p162
      %p165 = scmp.ne.s32.totalorder %s150, %s164
      %p166 = scmp.eq.s32.totalorder %s30, 0
      %p167 = por %p165, %p166
      %s168 = ssub.s32 %s24, %s31
      %p169 = scmp.eq.s32.totalorder %s168, 0
      %s171 = sadd.s32 %s170, 1
      %s172 = scalar_select %p169, %s170, %s171
      %p175 = pneg %p169
      %p176 = scmp.eq.s32.totalorder %s24, 1
      %p177 = por %p175, %p176
      %p178 = scmp.ne.s32.totalorder %s170, %s173
      %p179 = scmp.eq.s32.totalorder %s24, 0
      %p180 = por %p178, %p179
      %p181 = scmp.ne.s32.totalorder %s170, %s173
      %p182 = scmp.eq.s32.totalorder %s29, 1
      %p183 = por %p181, %p182
      %p184 = scmp.ne.s32.totalorder %s173, %s174
      %p185 = scmp.eq.s32.totalorder %s29, 0
      %p186 = por %p184, %p185
      %p187 = scmp.ne.s32.totalorder %s173, %s174
      %p188 = scmp.eq.s32.totalorder %s30, 1
      %p189 = por %p187, %p188
      %p191 = scmp.ne.s32.totalorder %s174, %s190
      %p192 = scmp.eq.s32.totalorder %s30, 0
      %p193 = por %p191, %p192
      %s194 = ssub.s32 %s24, %s31
      %p195 = scmp.eq.s32.totalorder %s194, 0
      %s197 = sadd.s32 %s196, 1
      %s198 = scalar_select %p195, %s196, %s197
      %p201 = pneg %p195
      %p202 = scmp.eq.s32.totalorder %s24, 1
      %p203 = por %p201, %p202
      %p204 = scmp.ne.s32.totalorder %s196, %s199
      %p205 = scmp.eq.s32.totalorder %s24, 0
      %p206 = por %p204, %p205
      %p207 = scmp.ne.s32.totalorder %s196, %s199
      %p208 = scmp.eq.s32.totalorder %s29, 1
      %p209 = por %p207, %p208
      %p210 = scmp.ne.s32.totalorder %s199, %s200
      %p211 = scmp.eq.s32.totalorder %s29, 0
      %p212 = por %p210, %p211
      %p213 = scmp.ne.s32.totalorder %s199, %s200
      %p214 = scmp.eq.s32.totalorder %s30, 1
      %p215 = por %p213, %p214
      %p217 = scmp.ne.s32.totalorder %s200, %s216
      %p218 = scmp.eq.s32.totalorder %s30, 0
      %p219 = por %p217, %p218
      %p220 = scmp.le.s32.totalorder 1, %s24
      %p221 = scmp.lt.s32.totalorder %s24, 3
      %p222 = pnand %p220, %p221
      %p223 = pneg %p222
      // Predicated region
      $region9: #{tpu_custom_call.1} parent=5 // pred_check
        _
      $region10: #{tpu_custom_call.1} parent=5 // pred_check_branch
        %225 = sbr.rel (%p222) target = $region12
      $region11: #{tpu_custom_call.1} parent=5 // pred_region
        %s226 = ssub.s32 %s24, 1
        // Predicated region
        $region13: #{tpu_custom_call.1} parent=11 // pred_check
          %p227 = pneg %p71
        $region14: #{tpu_custom_call.1} parent=11 // pred_check_branch
          %229 = sbr.rel (%p227) target = $region16
        $region15: #{tpu_custom_call.1} parent=11 // pred_region
          _
        $region16: #{tpu_custom_call.1} parent=11 // pred_fallthru
          _
        // Predicated region
        $region17: #{tpu_custom_call.1} parent=11 // pred_check
          %p230 = pneg %p92
        $region18: #{tpu_custom_call.1} parent=11 // pred_check_branch
          %232 = sbr.rel (%p230) target = $region20
        $region19: #{tpu_custom_call.1} parent=11 // pred_region
          _
        $region20: #{tpu_custom_call.1} parent=11 // pred_fallthru
          _
        // Predicated region
        $region21: #{tpu_custom_call.1} parent=11 // pred_check
          %p233 = pneg %p113
        $region22: #{tpu_custom_call.1} parent=11 // pred_check_branch
          %235 = sbr.rel (%p233) target = $region24
        $region23: #{tpu_custom_call.1} parent=11 // pred_region
          _
        $region24: #{tpu_custom_call.1} parent=11 // pred_fallthru
          _
        // Predicated region
        $region25: #{tpu_custom_call.1} parent=11 // pred_check
          %p236 = pneg %p160
        $region26: #{tpu_custom_call.1} parent=11 // pred_check_branch
          %238 = sbr.rel (%p236) target = $region28
        $region27: #{tpu_custom_call.1} parent=11 // pred_region
          %s240 = ssub.s32 2048, 2048
          %241 = vsyncadd [#allocation6], %s240
          %s242 = sshll.u32 [#allocation5], 4
          %s243 = int_to_ptr.vmem [resolvable:$true] %s242
          %248 = dma.hbm_to_vmem [thread:$0]  %s5, 2048, %s243, [#allocation6], 128, 128, 8
        $region28: #{tpu_custom_call.1} parent=11 // pred_fallthru
          _
      $region12: #{tpu_custom_call.1} parent=5 // pred_fallthru
        _
      %p249 = scmp.lt.s32.totalorder %s24, 2
      // Predicated region
      $region29: #{tpu_custom_call.1} parent=5 // pred_check
        %p250 = pneg %p249
      $region30: #{tpu_custom_call.1} parent=5 // pred_check_branch
        %252 = sbr.rel (%p250) target = $region32
      $region31: #{tpu_custom_call.1} parent=5 // pred_region
        // Predicated region
        $region33: #{tpu_custom_call.1} parent=31 // pred_check
          %p253 = pneg %p44
        $region34: #{tpu_custom_call.1} parent=31 // pred_check_branch
          %255 = sbr.rel (%p253) target = $region36
        $region35: #{tpu_custom_call.1} parent=31 // pred_region
          %s256 = sand.u32 %s34, 1
          %s257 = scalar_lea.sflag [#allocation3], %s256
          %s258 = sand.u32 %s34, 1
          %s259 = smul.addr %s258, 128
          %s260 = scalar_lea.vmem [#allocation2], %s259
          %s261 = smul.u32 16, %s24
          %s263 = ssub.s32 2048, 2048
          %264 = vsyncadd %s257, %s263
          %s265 = smul.addr %s261, 2
          %s266 = smul.addr %s265, 64
          %s267 = scalar_lea.hbm %s0, %s266
          %s268 = sshll.u32 %s260, 4
          %s269 = int_to_ptr.vmem [resolvable:$true] %s268
          %274 = dma.hbm_to_vmem [thread:$0]  %s267, 2048, %s269, %s257, 128, 128, 8
        $region36: #{tpu_custom_call.1} parent=31 // pred_fallthru
          _
        // Predicated region
        $region37: #{tpu_custom_call.1} parent=31 // pred_check
          %p275 = pneg %p133
        $region38: #{tpu_custom_call.1} parent=31 // pred_check_branch
          %277 = sbr.rel (%p275) target = $region40
        $region39: #{tpu_custom_call.1} parent=31 // pred_region
          %s278 = smul.u32 16, %s24
          %p279 = scmp.lt.s32.totalorder %s278, 31
          %s280 = scalar_select %p279, %s278, 31
          %s281 = smul.addr %s280, 4
          %s282 = scalar_lea.vmem %s4, %s281
          %s283 = smul.u32 16, %s24
        $region40: #{tpu_custom_call.1} parent=31 // pred_fallthru
          _
      $region32: #{tpu_custom_call.1} parent=5 // pred_fallthru
        _
      %p284 = scmp.le.s32.totalorder 1, %s24
      %p285 = scmp.lt.s32.totalorder %s24, 3
      %p286 = pnand %p284, %p285
      %p287 = pneg %p286
      // Predicated region
      $region41: #{tpu_custom_call.1} parent=5 // pred_check
        _
      $region42: #{tpu_custom_call.1} parent=5 // pred_check_branch
        %289 = sbr.rel (%p286) target = $region44
      $region43: #{tpu_custom_call.1} parent=5 // pred_region
        %s290 = ssub.s32 %s24, 1
        %s291 = sand.u32 %s37, 1
        %s292 = scalar_lea.sflag [#allocation3], %s291
        %s293 = sand.u32 %s37, 1
        %s294 = smul.addr %s293, 128
        %s295 = scalar_lea.vmem [#allocation2], %s294
        // Predicated region
        $region45: #{tpu_custom_call.1} parent=43 // pred_check
          %p296 = pneg %p50
        $region46: #{tpu_custom_call.1} parent=43 // pred_check_branch
          %298 = sbr.rel (%p296) target = $region48
        $region47: #{tpu_custom_call.1} parent=43 // pred_region
          %299 = dma.done %s292, 2048
        $region48: #{tpu_custom_call.1} parent=43 // pred_fallthru
          _
        // Predicated region
        $region49: #{tpu_custom_call.1} parent=43 // pred_check
          %p300 = pneg %p160
        $region50: #{tpu_custom_call.1} parent=43 // pred_check_branch
          %302 = sbr.rel (%p300) target = $region52
        $region51: #{tpu_custom_call.1} parent=43 // pred_region
          %303 = dma.done [#allocation6], 2048
        $region52: #{tpu_custom_call.1} parent=43 // pred_fallthru
          _
        %s304 = sand.u32 %s37, 1
        %s305 = scalar_lea.sflag [#allocation3], %s304
        %s306 = sand.u32 %s37, 1
        %s307 = smul.addr %s306, 128
        %s308 = scalar_lea.vmem [#allocation2], %s307
        %p309 = pneg %p50
        %p310 = pneg %p47
        %p311 = pneg %p71
        %p312 = pneg %p68
        %p313 = pneg %p92
        %p314 = pneg %p89
        %p315 = pneg %p113
        %p316 = pneg %p110
        %s317 = smul.u32 16, %s29
        %p318 = scmp.lt.s32.totalorder %s317, 31
        %s319 = scalar_select %p318, %s317, 31
        %s320 = smul.addr %s319, 4
        %s321 = scalar_lea.vmem %s4, %s320
        %p322 = pneg %p139
        %p323 = pneg %p136
        %p324 = pneg %p160
        %p325 = pneg %p157
        %p326 = pneg %p186
        %p327 = pneg %p183
        %s328 = sand.u32 %s173, 1
        %s329 = scalar_lea.sflag [#allocation4], %s328
        %s330 = sand.u32 %s173, 1
        %s331 = smul.addr %s330, 64
        %s332 = scalar_lea.vmem [#allocation7], %s331
        %p333 = pneg %p212
        %p334 = pneg %p209
        %s335 = sand.u32 %s199, 1
        %s336 = scalar_lea.sflag [#allocation9], %s335
        %s337 = sand.u32 %s199, 1
        %s338 = smul.addr %s337, 128
        %s339 = scalar_lea.vmem [#allocation8], %s338
        %s340 = smul.u32 16, %s29
        %s341 = smul.u32 16, %s29
        %p342 = scmp.lt.s32.totalorder %s341, 31
        %s343 = scalar_select %p342, %s341, 31
        %s344 = smul.addr %s343, 4
        %s345 = scalar_lea.vmem %s4, %s344
        %s346 = smul.u32 16, %s29
        %s347 = smul.u32 16, %s29
        %s348 = smul.u32 16, %s29
        %s350 = smul.u32 %s29, 128
        %v351 = vld [vmem:[%s1] sm:$0xf]
        %v352 = vld [vmem:[%s1 + $0x4] sm:$0xf]
        %v353 = vld [vmem:[%s1 + $0x8] sm:$0xf]
        %v354 = vld [vmem:[%s1 + $0xc] sm:$0xf]
        %v355 = vld [vmem:[%s1 + $0x10] sm:$0xf]
        %v356 = vld [vmem:[%s1 + $0x14] sm:$0xf]
        %v357 = vld [vmem:[%s1 + $0x18] sm:$0xf]
        %v358 = vld [vmem:[%s1 + $0x1c] sm:$0xf]
        %v359 = vld [vmem:[%s1 + $0x20] sm:$0xf]
        %v360 = vld [vmem:[%s1 + $0x24] sm:$0xf]
        %v361 = vld [vmem:[%s1 + $0x28] sm:$0xf]
        %v362 = vld [vmem:[%s1 + $0x2c] sm:$0xf]
        %v363 = vld [vmem:[%s1 + $0x30] sm:$0xf]
        %v364 = vld [vmem:[%s1 + $0x34] sm:$0xf]
        %v365 = vld [vmem:[%s1 + $0x38] sm:$0xf]
        %v366 = vld [vmem:[%s1 + $0x3c] sm:$0xf]
        %v367 = vld [vmem:[%s1 + $0x40] sm:$0xf]
        %v368 = vld [vmem:[%s1 + $0x44] sm:$0xf]
        %v369 = vld [vmem:[%s1 + $0x48] sm:$0xf]
        %v370 = vld [vmem:[%s1 + $0x4c] sm:$0xf]
        %v371 = vld [vmem:[%s1 + $0x50] sm:$0xf]
        %v372 = vld [vmem:[%s1 + $0x54] sm:$0xf]
        %v373 = vld [vmem:[%s1 + $0x58] sm:$0xf]
        %v374 = vld [vmem:[%s1 + $0x5c] sm:$0xf]
        %v375 = vld [vmem:[%s1 + $0x60] sm:$0xf]
        %v376 = vld [vmem:[%s1 + $0x64] sm:$0xf]
        %v377 = vld [vmem:[%s1 + $0x68] sm:$0xf]
        %v378 = vld [vmem:[%s1 + $0x6c] sm:$0xf]
        %v379 = vld [vmem:[%s1 + $0x70] sm:$0xf]
        %v380 = vld [vmem:[%s1 + $0x74] sm:$0xf]
        %v381 = vld [vmem:[%s1 + $0x78] sm:$0xf]
        %v382 = vld [vmem:[%s1 + $0x7c] sm:$0xf]
        %s383 = sshra.s32 %s350, 3
        %s384 = sand.u32 %s350, 7
        %s385 = smul.addr %s383, 4
        %s386 = scalar_lea.vmem %s1, %s385
        %v387 = vld [vmem:[%s386] sm:$0xf]
        %v388 = vld [vmem:[%s386 + $0x4] sm:$0xf]
        %v389 = vld [vmem:[%s386 + $0x8] sm:$0xf]
        %v390 = vld [vmem:[%s386 + $0xc] sm:$0xf]
        %v391 = vld [vmem:[%s386 + $0x10] sm:$0xf]
        %v392 = vld [vmem:[%s386 + $0x14] sm:$0xf]
        %v393 = vld [vmem:[%s386 + $0x18] sm:$0xf]
        %v394 = vld [vmem:[%s386 + $0x1c] sm:$0xf]
        %v395 = vld [vmem:[%s386 + $0x20] sm:$0xf]
        %v396 = vld [vmem:[%s386 + $0x24] sm:$0xf]
        %v397 = vld [vmem:[%s386 + $0x28] sm:$0xf]
        %v398 = vld [vmem:[%s386 + $0x2c] sm:$0xf]
        %v399 = vld [vmem:[%s386 + $0x30] sm:$0xf]
        %v400 = vld [vmem:[%s386 + $0x34] sm:$0xf]
        %v401 = vld [vmem:[%s386 + $0x38] sm:$0xf]
        %v402 = vld [vmem:[%s386 + $0x3c] sm:$0xf]
        %v403 = vld [vmem:[%s295] sm:$0xff]
        %v404 = vld [vmem:[%s295 + $0x8] sm:$0xff]
        %v405 = vld [vmem:[%s295 + $0x10] sm:$0xff]
        %v406 = vld [vmem:[%s295 + $0x18] sm:$0xff]
        %v407 = vld [vmem:[%s295 + $0x20] sm:$0xff]
        %v408 = vld [vmem:[%s295 + $0x28] sm:$0xff]
        %v409 = vld [vmem:[%s295 + $0x30] sm:$0xff]
        %v410 = vld [vmem:[%s295 + $0x38] sm:$0xff]
        %v411 = vld [vmem:[%s295 + $0x40] sm:$0xff]
        %v412 = vld [vmem:[%s295 + $0x48] sm:$0xff]
        %v413 = vld [vmem:[%s295 + $0x50] sm:$0xff]
        %v414 = vld [vmem:[%s295 + $0x58] sm:$0xff]
        %v415 = vld [vmem:[%s295 + $0x60] sm:$0xff]
        %v416 = vld [vmem:[%s295 + $0x68] sm:$0xff]
        %v417 = vld [vmem:[%s295 + $0x70] sm:$0xff]
        %v418 = vld [vmem:[%s295 + $0x78] sm:$0xff]
        %v435 = vunpack.c.l.b16 %v403
        %v436 = vunpack.c.h.b16 %v403
        %v437 = vunpack.c.l.b16 %v404
        %v438 = vunpack.c.h.b16 %v404
        %v439 = vunpack.c.l.b16 %v405
        %v440 = vunpack.c.h.b16 %v405
        %v441 = vunpack.c.l.b16 %v406
        %v442 = vunpack.c.h.b16 %v406
        %v443 = vunpack.c.l.b16 %v407
        %v444 = vunpack.c.h.b16 %v407
        %v445 = vunpack.c.l.b16 %v408
        %v446 = vunpack.c.h.b16 %v408
        %v447 = vunpack.c.l.b16 %v409
        %v448 = vunpack.c.h.b16 %v409
        %v449 = vunpack.c.l.b16 %v410
        %v450 = vunpack.c.h.b16 %v410
        %v451 = vunpack.c.l.b16 %v411
        %v452 = vunpack.c.h.b16 %v411
        %v453 = vunpack.c.l.b16 %v412
        %v454 = vunpack.c.h.b16 %v412
        %v455 = vunpack.c.l.b16 %v413
        %v456 = vunpack.c.h.b16 %v413
        %v457 = vunpack.c.l.b16 %v414
        %v458 = vunpack.c.h.b16 %v414
        %v459 = vunpack.c.l.b16 %v415
        %v460 = vunpack.c.h.b16 %v415
        %v461 = vunpack.c.l.b16 %v416
        %v462 = vunpack.c.h.b16 %v416
        %v463 = vunpack.c.l.b16 %v417
        %v464 = vunpack.c.h.b16 %v417
        %v465 = vunpack.c.l.b16 %v418
        %v466 = vunpack.c.h.b16 %v418
        %v467 = vpack.c.b16 %v437, %v435
        %v468 = vpack.c.b16 %v438, %v436
        %v469 = vpack.c.b16 %v441, %v439
        %v470 = vpack.c.b16 %v442, %v440
        %v471 = vpack.c.b16 %v445, %v443
        %v472 = vpack.c.b16 %v446, %v444
        %v473 = vpack.c.b16 %v449, %v447
        %v474 = vpack.c.b16 %v450, %v448
        %v475 = vpack.c.b16 %v453, %v451
        %v476 = vpack.c.b16 %v454, %v452
        %v477 = vpack.c.b16 %v457, %v455
        %v478 = vpack.c.b16 %v458, %v456
        %v479 = vpack.c.b16 %v461, %v459
        %v480 = vpack.c.b16 %v462, %v460
        %v481 = vpack.c.b16 %v465, %v463
        %v482 = vpack.c.b16 %v466, %v464
        %v531 = vunpack.c.l.b16 %v351
        %v532 = vunpack.c.l.b16 %v352
        %v533 = vunpack.c.l.b16 %v353
        %v534 = vunpack.c.l.b16 %v354
        %v535 = vunpack.c.l.b16 %v355
        %v536 = vunpack.c.l.b16 %v356
        %v537 = vunpack.c.l.b16 %v357
        %v538 = vunpack.c.l.b16 %v358
        %v539 = vunpack.c.l.b16 %v359
        %v540 = vunpack.c.l.b16 %v360
        %v541 = vunpack.c.l.b16 %v361
        %v542 = vunpack.c.l.b16 %v362
        %v543 = vunpack.c.l.b16 %v363
        %v544 = vunpack.c.l.b16 %v364
        %v545 = vunpack.c.l.b16 %v365
        %v546 = vunpack.c.l.b16 %v366
        %v547 = vunpack.c.l.b16 %v367
        %v548 = vunpack.c.l.b16 %v368
        %v549 = vunpack.c.l.b16 %v369
        %v550 = vunpack.c.l.b16 %v370
        %v551 = vunpack.c.l.b16 %v371
        %v552 = vunpack.c.l.b16 %v372
        %v553 = vunpack.c.l.b16 %v373
        %v554 = vunpack.c.l.b16 %v374
        %v555 = vunpack.c.l.b16 %v375
        %v556 = vunpack.c.l.b16 %v376
        %v557 = vunpack.c.l.b16 %v377
        %v558 = vunpack.c.l.b16 %v378
        %v559 = vunpack.c.l.b16 %v379
        %v560 = vunpack.c.l.b16 %v380
        %v561 = vunpack.c.l.b16 %v381
        %v562 = vunpack.c.l.b16 %v382
        %v563 = vpack.c.b16 %v532, %v531
        %v564 = vpack.c.b16 %v534, %v533
        %v565 = vpack.c.b16 %v536, %v535
        %v566 = vpack.c.b16 %v538, %v537
        %v567 = vpack.c.b16 %v540, %v539
        %v568 = vpack.c.b16 %v542, %v541
        %v569 = vpack.c.b16 %v544, %v543
        %v570 = vpack.c.b16 %v546, %v545
        %v571 = vpack.c.b16 %v548, %v547
        %v572 = vpack.c.b16 %v550, %v549
        %v573 = vpack.c.b16 %v552, %v551
        %v574 = vpack.c.b16 %v554, %v553
        %v575 = vpack.c.b16 %v556, %v555
        %v576 = vpack.c.b16 %v558, %v557
        %v577 = vpack.c.b16 %v560, %v559
        %v578 = vpack.c.b16 %v562, %v561
        %595 = vmatprep.subr.bf16.mxu0 0
        %596 = vmatpush1.bf16.msra.mxu0 %v570
        %597 = vmatprep.subr.bf16.mxu0 0
        %598 = vmatpush1.bf16.msra.mxu0 %v569
        %599 = vmatprep.subr.bf16.mxu0 0
        %600 = vmatpush1.bf16.msra.mxu0 %v568
        %601 = vmatprep.subr.bf16.mxu0 0
        %602 = vmatpush1.bf16.msra.mxu0 %v567
        %603 = vmatprep.subr.bf16.mxu0 0
        %604 = vmatpush1.bf16.msra.mxu0 %v566
        %605 = vmatprep.subr.bf16.mxu0 0
        %606 = vmatpush1.bf16.msra.mxu0 %v565
        %607 = vmatprep.subr.bf16.mxu0 0
        %608 = vmatpush1.bf16.msra.mxu0 %v564
        %609 = vmatprep.subr.bf16.mxu0 0
        %610 = vmatpush1.bf16.msra.mxu0 %v563
        %611 = vmatprep.subr.bf16.mxu0 0
        %612 = vmatpush2.bf16.msra.mxu0 %v578
        %613 = vmatprep.subr.bf16.mxu0 0
        %614 = vmatpush2.bf16.msra.mxu0 %v577
        %615 = vmatprep.subr.bf16.mxu0 0
        %616 = vmatpush2.bf16.msra.mxu0 %v576
        %617 = vmatprep.subr.bf16.mxu0 0
        %618 = vmatpush2.bf16.msra.mxu0 %v575
        %619 = vmatprep.subr.bf16.mxu0 0
        %620 = vmatpush2.bf16.msra.mxu0 %v574
        %621 = vmatprep.subr.bf16.mxu0 0
        %622 = vmatpush2.bf16.msra.mxu0 %v573
        %623 = vmatprep.subr.bf16.mxu0 0
        %624 = vmatpush2.bf16.msra.mxu0 %v572
        %625 = vmatprep.subr.bf16.mxu0 0
        %626 = vmatpush2.bf16.msra.mxu0 %v571
        %627 = vmatprep.mubr.bf16.mxu0 %v468
        %628 = vmatmul.mubr.bf16.gmra.mxu0 %v467
        %v629 = vpop.f32.mrf.mxu0
        %v630 = vadd.f32 0.0, %v629
        %v631 = vpop.f32.mrf.mxu0
        %v632 = vpop.f32.mrf.mxu0
        %v633 = vadd.f32 0.0, %v632
        %v634 = vpop.f32.mrf.mxu0
        %635 = vmatprep.mubr.bf16.mxu0 %v470
        %636 = vmatmul.mubr.bf16.gmra.mxu0 %v469
        %v637 = vpop.f32.mrf.mxu0
        %v638 = vadd.f32 0.0, %v637
        %v639 = vpop.f32.mrf.mxu0
        %v640 = vpop.f32.mrf.mxu0
        %v641 = vadd.f32 0.0, %v640
        %v642 = vpop.f32.mrf.mxu0
        %643 = vmatprep.mubr.bf16.mxu0 %v472
        %644 = vmatmul.mubr.bf16.gmra.mxu0 %v471
        %v645 = vpop.f32.mrf.mxu0
        %v646 = vadd.f32 0.0, %v645
        %v647 = vpop.f32.mrf.mxu0
        %v648 = vpop.f32.mrf.mxu0
        %v649 = vadd.f32 0.0, %v648
        %v650 = vpop.f32.mrf.mxu0
        %651 = vmatprep.mubr.bf16.mxu0 %v474
        %652 = vmatmul.mubr.bf16.gmra.mxu0 %v473
        %v653 = vpop.f32.mrf.mxu0
        %v654 = vadd.f32 0.0, %v653
        %v655 = vpop.f32.mrf.mxu0
        %v656 = vpop.f32.mrf.mxu0
        %v657 = vadd.f32 0.0, %v656
        %v658 = vpop.f32.mrf.mxu0
        %659 = vmatprep.mubr.bf16.mxu0 %v476
        %660 = vmatmul.mubr.bf16.gmra.mxu0 %v475
        %v661 = vpop.f32.mrf.mxu0
        %v662 = vadd.f32 0.0, %v661
        %v663 = vpop.f32.mrf.mxu0
        %v664 = vpop.f32.mrf.mxu0
        %v665 = vadd.f32 0.0, %v664
        %v666 = vpop.f32.mrf.mxu0
        %667 = vmatprep.mubr.bf16.mxu0 %v478
        %668 = vmatmul.mubr.bf16.gmra.mxu0 %v477
        %v669 = vpop.f32.mrf.mxu0
        %v670 = vadd.f32 0.0, %v669
        %v671 = vpop.f32.mrf.mxu0
        %v672 = vpop.f32.mrf.mxu0
        %v673 = vadd.f32 0.0, %v672
        %v674 = vpop.f32.mrf.mxu0
        %675 = vmatprep.mubr.bf16.mxu0 %v480
        %676 = vmatmul.mubr.bf16.gmra.mxu0 %v479
        %v677 = vpop.f32.mrf.mxu0
        %v678 = vadd.f32 0.0, %v677
        %v679 = vpop.f32.mrf.mxu0
        %v680 = vpop.f32.mrf.mxu0
        %v681 = vadd.f32 0.0, %v680
        %v682 = vpop.f32.mrf.mxu0
        %683 = vmatprep.mubr.bf16.mxu0 %v482
        %684 = vmatmul.mubr.bf16.gmra.mxu0 %v481
        %v685 = vpop.f32.mrf.mxu0
        %v686 = vadd.f32 0.0, %v685
        %v687 = vpop.f32.mrf.mxu0
        %v688 = vpop.f32.mrf.mxu0
        %v689 = vadd.f32 0.0, %v688
        %v690 = vpop.f32.mrf.mxu0
        %691 = vdwg.mxu0
        %v692 = vpack.c.bf16 %v633, %v630
        %v693 = vpack.c.bf16 %v641, %v638
        %v694 = vpack.c.bf16 %v649, %v646
        %v695 = vpack.c.bf16 %v657, %v654
        %v696 = vpack.c.bf16 %v665, %v662
        %v697 = vpack.c.bf16 %v673, %v670
        %v698 = vpack.c.bf16 %v681, %v678
        %v699 = vpack.c.bf16 %v689, %v686
        %v700 = vld [vmem:[%s2] sm:$0xf]
        %v701 = vld [vmem:[%s2 + $0x4] sm:$0xf]
        %v702 = vld [vmem:[%s2 + $0x8] sm:$0xf]
        %v703 = vld [vmem:[%s2 + $0xc] sm:$0xf]
        %v704 = vld [vmem:[%s2 + $0x10] sm:$0xf]
        %v705 = vld [vmem:[%s2 + $0x14] sm:$0xf]
        %v706 = vld [vmem:[%s2 + $0x18] sm:$0xf]
        %v707 = vld [vmem:[%s2 + $0x1c] sm:$0xf]
        %v724 = vunpack.c.l.b16 %v387
        %v725 = vunpack.c.l.b16 %v388
        %v726 = vunpack.c.l.b16 %v389
        %v727 = vunpack.c.l.b16 %v390
        %v728 = vunpack.c.l.b16 %v391
        %v729 = vunpack.c.l.b16 %v392
        %v730 = vunpack.c.l.b16 %v393
        %v731 = vunpack.c.l.b16 %v394
        %v732 = vunpack.c.l.b16 %v395
        %v733 = vunpack.c.l.b16 %v396
        %v734 = vunpack.c.l.b16 %v397
        %v735 = vunpack.c.l.b16 %v398
        %v736 = vunpack.c.l.b16 %v399
        %v737 = vunpack.c.l.b16 %v400
        %v738 = vunpack.c.l.b16 %v401
        %v739 = vunpack.c.l.b16 %v402
        %v740 = vpack.c.b16 %v725, %v724
        %v741 = vpack.c.b16 %v727, %v726
        %v742 = vpack.c.b16 %v729, %v728
        %v743 = vpack.c.b16 %v731, %v730
        %v744 = vpack.c.b16 %v733, %v732
        %v745 = vpack.c.b16 %v735, %v734
        %v746 = vpack.c.b16 %v737, %v736
        %v747 = vpack.c.b16 %v739, %v738
        %v752 = vunpack.c.l.b16 %v704
        %v753 = vunpack.c.l.b16 %v705
        %v754 = vunpack.c.l.b16 %v706
        %v755 = vunpack.c.l.b16 %v707
        %v756 = vpack.c.b16 %v753, %v752
        %v757 = vpack.c.b16 %v755, %v754
        %vm760 = vcmask 261120
        %v762 = vsel %vm760, %v740, 0
        %v765 = vsel %vm760, %v741, 0
        %v768 = vsel %vm760, %v742, 0
        %v771 = vsel %vm760, %v743, 0
        %v774 = vsel %vm760, %v744, 0
        %v777 = vsel %vm760, %v745, 0
        %v780 = vsel %vm760, %v746, 0
        %v783 = vsel %vm760, %v747, 0
        %785 = vmatprep.subr.bf16.mxu0 0
        %786 = vmatpush1.bf16.msra.mxu0 0
        %787 = vmatprep.subr.bf16.mxu0 0
        %788 = vmatpush1.bf16.msra.mxu0 0
        %789 = vmatprep.subr.bf16.mxu0 0
        %790 = vmatpush1.bf16.msra.mxu0 0
        %791 = vmatprep.subr.bf16.mxu0 0
        %792 = vmatpush1.bf16.msra.mxu0 0
        %793 = vmatprep.subr.bf16.mxu0 0
        %794 = vmatpush1.bf16.msra.mxu0 0
        %795 = vmatprep.subr.bf16.mxu0 0
        %796 = vmatpush1.bf16.msra.mxu0 0
        %797 = vmatprep.subr.bf16.mxu0 0
        %798 = vmatpush1.bf16.msra.mxu0 %v757
        %799 = vmatprep.subr.bf16.mxu0 0
        %800 = vmatpush1.bf16.msra.mxu0 %v756
        %801 = vmatprep.subr.bf16.mxu0 0
        %802 = vmatpush2.bf16.msra.mxu0 0
        %803 = vmatprep.subr.bf16.mxu0 0
        %804 = vmatpush2.bf16.msra.mxu0 0
        %805 = vmatprep.subr.bf16.mxu0 0
        %806 = vmatpush2.bf16.msra.mxu0 0
        %807 = vmatprep.subr.bf16.mxu0 0
        %808 = vmatpush2.bf16.msra.mxu0 0
        %809 = vmatprep.subr.bf16.mxu0 0
        %810 = vmatpush2.bf16.msra.mxu0 0
        %811 = vmatprep.subr.bf16.mxu0 0
        %812 = vmatpush2.bf16.msra.mxu0 0
        %813 = vmatprep.subr.bf16.mxu0 0
        %814 = vmatpush2.bf16.msra.mxu0 0
        %815 = vmatprep.subr.bf16.mxu0 0
        %816 = vmatpush2.bf16.msra.mxu0 0
        %817 = vmatprep.mubr.bf16.mxu0 0
        %818 = vmatmul.mubr.bf16.gmra.mxu0 %v762
        %v819 = vpop.f32.mrf.mxu0
        %v820 = vadd.f32 0.0, %v819
        %v821 = vpop.f32.mrf.mxu0
        %v822 = vpop.f32.mrf.mxu0
        %v823 = vadd.f32 0.0, %v822
        %v824 = vpop.f32.mrf.mxu0
        %825 = vmatprep.mubr.bf16.mxu0 0
        %826 = vmatmul.mubr.bf16.gmra.mxu0 %v765
        %v827 = vpop.f32.mrf.mxu0
        %v828 = vadd.f32 0.0, %v827
        %v829 = vpop.f32.mrf.mxu0
        %v830 = vpop.f32.mrf.mxu0
        %v831 = vadd.f32 0.0, %v830
        %v832 = vpop.f32.mrf.mxu0
        %833 = vmatprep.mubr.bf16.mxu0 0
        %834 = vmatmul.mubr.bf16.gmra.mxu0 %v768
        %v835 = vpop.f32.mrf.mxu0
        %v836 = vadd.f32 0.0, %v835
        %v837 = vpop.f32.mrf.mxu0
        %v838 = vpop.f32.mrf.mxu0
        %v839 = vadd.f32 0.0, %v838
        %v840 = vpop.f32.mrf.mxu0
        %841 = vmatprep.mubr.bf16.mxu0 0
        %842 = vmatmul.mubr.bf16.gmra.mxu0 %v771
        %v843 = vpop.f32.mrf.mxu0
        %v844 = vadd.f32 0.0, %v843
        %v845 = vpop.f32.mrf.mxu0
        %v846 = vpop.f32.mrf.mxu0
        %v847 = vadd.f32 0.0, %v846
        %v848 = vpop.f32.mrf.mxu0
        %849 = vmatprep.mubr.bf16.mxu0 0
        %850 = vmatmul.mubr.bf16.gmra.mxu0 %v774
        %v851 = vpop.f32.mrf.mxu0
        %v852 = vadd.f32 0.0, %v851
        %v853 = vpop.f32.mrf.mxu0
        %v854 = vpop.f32.mrf.mxu0
        %v855 = vadd.f32 0.0, %v854
        %v856 = vpop.f32.mrf.mxu0
        %857 = vmatprep.mubr.bf16.mxu0 0
        %858 = vmatmul.mubr.bf16.gmra.mxu0 %v777
        %v859 = vpop.f32.mrf.mxu0
        %v860 = vadd.f32 0.0, %v859
        %v861 = vpop.f32.mrf.mxu0
        %v862 = vpop.f32.mrf.mxu0
        %v863 = vadd.f32 0.0, %v862
        %v864 = vpop.f32.mrf.mxu0
        %865 = vmatprep.mubr.bf16.mxu0 0
        %866 = vmatmul.mubr.bf16.gmra.mxu0 %v780
        %v867 = vpop.f32.mrf.mxu0
        %v868 = vadd.f32 0.0, %v867
        %v869 = vpop.f32.mrf.mxu0
        %v870 = vpop.f32.mrf.mxu0
        %v871 = vadd.f32 0.0, %v870
        %v872 = vpop.f32.mrf.mxu0
        %873 = vmatprep.mubr.bf16.mxu0 0
        %874 = vmatmul.mubr.bf16.gmra.mxu0 %v783
        %v875 = vpop.f32.mrf.mxu0
        %v876 = vadd.f32 0.0, %v875
        %v877 = vpop.f32.mrf.mxu0
        %v878 = vpop.f32.mrf.mxu0
        %v879 = vadd.f32 0.0, %v878
        %v880 = vpop.f32.mrf.mxu0
        %881 = vdwg.mxu0
        %v886 = vunpack.c.l.b16 %v700
        %v887 = vunpack.c.l.b16 %v701
        %v888 = vunpack.c.l.b16 %v702
        %v889 = vunpack.c.l.b16 %v703
        %v890 = vpack.c.b16 %v887, %v886
        %v891 = vpack.c.b16 %v889, %v888
        %v895 = vsel %vm760, %v692, 0
        %v898 = vsel %vm760, %v693, 0
        %v901 = vsel %vm760, %v694, 0
        %v904 = vsel %vm760, %v695, 0
        %v907 = vsel %vm760, %v696, 0
        %v910 = vsel %vm760, %v697, 0
        %v913 = vsel %vm760, %v698, 0
        %v916 = vsel %vm760, %v699, 0
        %918 = vmatprep.subr.bf16.mxu0 0
        %919 = vmatpush1.bf16.msra.mxu0 0
        %920 = vmatprep.subr.bf16.mxu0 0
        %921 = vmatpush1.bf16.msra.mxu0 0
        %922 = vmatprep.subr.bf16.mxu0 0
        %923 = vmatpush1.bf16.msra.mxu0 0
        %924 = vmatprep.subr.bf16.mxu0 0
        %925 = vmatpush1.bf16.msra.mxu0 0
        %926 = vmatprep.subr.bf16.mxu0 0
        %927 = vmatpush1.bf16.msra.mxu0 0
        %928 = vmatprep.subr.bf16.mxu0 0
        %929 = vmatpush1.bf16.msra.mxu0 0
        %930 = vmatprep.subr.bf16.mxu0 0
        %931 = vmatpush1.bf16.msra.mxu0 %v891
        %932 = vmatprep.subr.bf16.mxu0 0
        %933 = vmatpush1.bf16.msra.mxu0 %v890
        %934 = vmatprep.subr.bf16.mxu0 0
        %935 = vmatpush2.bf16.msra.mxu0 0
        %936 = vmatprep.subr.bf16.mxu0 0
        %937 = vmatpush2.bf16.msra.mxu0 0
        %938 = vmatprep.subr.bf16.mxu0 0
        %939 = vmatpush2.bf16.msra.mxu0 0
        %940 = vmatprep.subr.bf16.mxu0 0
        %941 = vmatpush2.bf16.msra.mxu0 0
        %942 = vmatprep.subr.bf16.mxu0 0
        %943 = vmatpush2.bf16.msra.mxu0 0
        %944 = vmatprep.subr.bf16.mxu0 0
        %945 = vmatpush2.bf16.msra.mxu0 0
        %946 = vmatprep.subr.bf16.mxu0 0
        %947 = vmatpush2.bf16.msra.mxu0 0
        %948 = vmatprep.subr.bf16.mxu0 0
        %949 = vmatpush2.bf16.msra.mxu0 0
        %950 = vmatprep.mubr.bf16.mxu0 0
        %951 = vmatmul.mubr.bf16.gmra.mxu0 %v895
        %v952 = vpop.f32.mrf.mxu0
        %v953 = vadd.f32 %v820, %v952
        %v954 = vpop.f32.mrf.mxu0
        %v955 = vpop.f32.mrf.mxu0
        %v956 = vadd.f32 %v823, %v955
        %v957 = vpop.f32.mrf.mxu0
        %958 = vmatprep.mubr.bf16.mxu0 0
        %959 = vmatmul.mubr.bf16.gmra.mxu0 %v898
        %v960 = vpop.f32.mrf.mxu0
        %v961 = vadd.f32 %v828, %v960
        %v962 = vpop.f32.mrf.mxu0
        %v963 = vpop.f32.mrf.mxu0
        %v964 = vadd.f32 %v831, %v963
        %v965 = vpop.f32.mrf.mxu0
        %966 = vmatprep.mubr.bf16.mxu0 0
        %967 = vmatmul.mubr.bf16.gmra.mxu0 %v901
        %v968 = vpop.f32.mrf.mxu0
        %v969 = vadd.f32 %v836, %v968
        %v970 = vpop.f32.mrf.mxu0
        %v971 = vpop.f32.mrf.mxu0
        %v972 = vadd.f32 %v839, %v971
        %v973 = vpop.f32.mrf.mxu0
        %974 = vmatprep.mubr.bf16.mxu0 0
        %975 = vmatmul.mubr.bf16.gmra.mxu0 %v904
        %v976 = vpop.f32.mrf.mxu0
        %v977 = vadd.f32 %v844, %v976
        %v978 = vpop.f32.mrf.mxu0
        %v979 = vpop.f32.mrf.mxu0
        %v980 = vadd.f32 %v847, %v979
        %v981 = vpop.f32.mrf.mxu0
        %982 = vmatprep.mubr.bf16.mxu0 0
        %983 = vmatmul.mubr.bf16.gmra.mxu0 %v907
        %v984 = vpop.f32.mrf.mxu0
        %v985 = vadd.f32 %v852, %v984
        %v986 = vpop.f32.mrf.mxu0
        %v987 = vpop.f32.mrf.mxu0
        %v988 = vadd.f32 %v855, %v987
        %v989 = vpop.f32.mrf.mxu0
        %990 = vmatprep.mubr.bf16.mxu0 0
        %991 = vmatmul.mubr.bf16.gmra.mxu0 %v910
        %v992 = vpop.f32.mrf.mxu0
        %v993 = vadd.f32 %v860, %v992
        %v994 = vpop.f32.mrf.mxu0
        %v995 = vpop.f32.mrf.mxu0
        %v996 = vadd.f32 %v863, %v995
        %v997 = vpop.f32.mrf.mxu0
        %998 = vmatprep.mubr.bf16.mxu0 0
        %999 = vmatmul.mubr.bf16.gmra.mxu0 %v913
        %v1000 = vpop.f32.mrf.mxu0
        %v1001 = vadd.f32 %v868, %v1000
        %v1002 = vpop.f32.mrf.mxu0
        %v1003 = vpop.f32.mrf.mxu0
        %v1004 = vadd.f32 %v871, %v1003
        %v1005 = vpop.f32.mrf.mxu0
        %1006 = vmatprep.mubr.bf16.mxu0 0
        %1007 = vmatmul.mubr.bf16.gmra.mxu0 %v916
        %v1008 = vpop.f32.mrf.mxu0
        %v1009 = vadd.f32 %v876, %v1008
        %v1010 = vpop.f32.mrf.mxu0
        %v1011 = vpop.f32.mrf.mxu0
        %v1012 = vadd.f32 %v879, %v1011
        %v1013 = vpop.f32.mrf.mxu0
        %1014 = vdwg.mxu0
        %v1015 = vld [vmem:[%s3] sm:$0x1]
        %v1017 = vlaneseq
        %v1018 = vshrl.u32 %v1017, 7
        %v1019 = vsub.s32 0, %v1018
        %v1020 = vrot.slane %v1015, %v1019
        %v1022 = vadd.f32 %v953, %v1020
        %v1023 = vadd.f32 %v956, %v1020
        %v1024 = vadd.f32 %v961, %v1020
        %v1025 = vadd.f32 %v964, %v1020
        %v1026 = vadd.f32 %v969, %v1020
        %v1027 = vadd.f32 %v972, %v1020
        %v1028 = vadd.f32 %v977, %v1020
        %v1029 = vadd.f32 %v980, %v1020
        %v1030 = vadd.f32 %v985, %v1020
        %v1031 = vadd.f32 %v988, %v1020
        %v1032 = vadd.f32 %v993, %v1020
        %v1033 = vadd.f32 %v996, %v1020
        %v1034 = vadd.f32 %v1001, %v1020
        %v1035 = vadd.f32 %v1004, %v1020
        %v1036 = vadd.f32 %v1009, %v1020
        %v1037 = vadd.f32 %v1012, %v1020
        %v1038 = vmax.f32 %v1022, 0.0
        %v1039 = vmax.f32 %v1023, 0.0
        %v1040 = vmax.f32 %v1024, 0.0
        %v1041 = vmax.f32 %v1025, 0.0
        %v1042 = vmax.f32 %v1026, 0.0
        %v1043 = vmax.f32 %v1027, 0.0
        %v1044 = vmax.f32 %v1028, 0.0
        %v1045 = vmax.f32 %v1029, 0.0
        %v1046 = vmax.f32 %v1030, 0.0
        %v1047 = vmax.f32 %v1031, 0.0
        %v1048 = vmax.f32 %v1032, 0.0
        %v1049 = vmax.f32 %v1033, 0.0
        %v1050 = vmax.f32 %v1034, 0.0
        %v1051 = vmax.f32 %v1035, 0.0
        %v1052 = vmax.f32 %v1036, 0.0
        %v1053 = vmax.f32 %v1037, 0.0
        %v1054 = vld [vmem:[%s345] sm:$0xf]
        %v1055 = vld [vmem:[%s345 + $0x4] sm:$0xf]
        %v1056 = vld [vmem:[%s345 + $0x8] sm:$0xf]
        %v1057 = vld [vmem:[%s345 + $0xc] sm:$0xf]
        %v1058 = vld [vmem:[%s345 + $0x10] sm:$0xf]
        %v1059 = vld [vmem:[%s345 + $0x14] sm:$0xf]
        %v1060 = vld [vmem:[%s345 + $0x18] sm:$0xf]
        %v1061 = vld [vmem:[%s345 + $0x1c] sm:$0xf]
        %v1062 = vld [vmem:[%s345 + $0x20] sm:$0xf]
        %v1063 = vld [vmem:[%s345 + $0x24] sm:$0xf]
        %v1064 = vld [vmem:[%s345 + $0x28] sm:$0xf]
        %v1065 = vld [vmem:[%s345 + $0x2c] sm:$0xf]
        %v1066 = vld [vmem:[%s345 + $0x30] sm:$0xf]
        %v1067 = vld [vmem:[%s345 + $0x34] sm:$0xf]
        %v1068 = vld [vmem:[%s345 + $0x38] sm:$0xf]
        %v1069 = vld [vmem:[%s345 + $0x3c] sm:$0xf]
        %v1070 = vunpack.c.l.bf16 %v1054
        %v1071 = vunpack.c.l.bf16 %v1055
        %v1072 = vunpack.c.l.bf16 %v1056
        %v1073 = vunpack.c.l.bf16 %v1057
        %v1074 = vunpack.c.l.bf16 %v1058
        %v1075 = vunpack.c.l.bf16 %v1059
        %v1076 = vunpack.c.l.bf16 %v1060
        %v1077 = vunpack.c.l.bf16 %v1061
        %v1078 = vunpack.c.l.bf16 %v1062
        %v1079 = vunpack.c.l.bf16 %v1063
        %v1080 = vunpack.c.l.bf16 %v1064
        %v1081 = vunpack.c.l.bf16 %v1065
        %v1082 = vunpack.c.l.bf16 %v1066
        %v1083 = vunpack.c.l.bf16 %v1067
        %v1084 = vunpack.c.l.bf16 %v1068
        %v1085 = vunpack.c.l.bf16 %v1069
        %v1086 = vmul.f32 %v1038, %v1070
        %v1087 = vmul.f32 %v1039, %v1071
        %v1088 = vmul.f32 %v1040, %v1072
        %v1089 = vmul.f32 %v1041, %v1073
        %v1090 = vmul.f32 %v1042, %v1074
        %v1091 = vmul.f32 %v1043, %v1075
        %v1092 = vmul.f32 %v1044, %v1076
        %v1093 = vmul.f32 %v1045, %v1077
        %v1094 = vmul.f32 %v1046, %v1078
        %v1095 = vmul.f32 %v1047, %v1079
        %v1096 = vmul.f32 %v1048, %v1080
        %v1097 = vmul.f32 %v1049, %v1081
        %v1098 = vmul.f32 %v1050, %v1082
        %v1099 = vmul.f32 %v1051, %v1083
        %v1100 = vmul.f32 %v1052, %v1084
        %v1101 = vmul.f32 %v1053, %v1085
        %v1102 = vpack.c.bf16 %v1087, %v1086
        %v1103 = vpack.c.bf16 %v1089, %v1088
        %v1104 = vpack.c.bf16 %v1091, %v1090
        %v1105 = vpack.c.bf16 %v1093, %v1092
        %v1106 = vpack.c.bf16 %v1095, %v1094
        %v1107 = vpack.c.bf16 %v1097, %v1096
        %v1108 = vpack.c.bf16 %v1099, %v1098
        %v1109 = vpack.c.bf16 %v1101, %v1100
        %v1110 = vld [vmem:[#allocation5] sm:$0xff]
        %v1111 = vld [vmem:[#allocation5 + $0x8] sm:$0xff]
        %v1112 = vld [vmem:[#allocation5 + $0x10] sm:$0xff]
        %v1113 = vld [vmem:[#allocation5 + $0x18] sm:$0xff]
        %v1114 = vld [vmem:[#allocation5 + $0x20] sm:$0xff]
        %v1115 = vld [vmem:[#allocation5 + $0x28] sm:$0xff]
        %v1116 = vld [vmem:[#allocation5 + $0x30] sm:$0xff]
        %v1117 = vld [vmem:[#allocation5 + $0x38] sm:$0xff]
        %v1118 = vld [vmem:[#allocation5 + $0x40] sm:$0xff]
        %v1119 = vld [vmem:[#allocation5 + $0x48] sm:$0xff]
        %v1120 = vld [vmem:[#allocation5 + $0x50] sm:$0xff]
        %v1121 = vld [vmem:[#allocation5 + $0x58] sm:$0xff]
        %v1122 = vld [vmem:[#allocation5 + $0x60] sm:$0xff]
        %v1123 = vld [vmem:[#allocation5 + $0x68] sm:$0xff]
        %v1124 = vld [vmem:[#allocation5 + $0x70] sm:$0xff]
        %v1125 = vld [vmem:[#allocation5 + $0x78] sm:$0xff]
        %v1142 = vunpack.c.l.b16 %v1110
        %v1143 = vunpack.c.h.b16 %v1110
        %v1144 = vunpack.c.l.b16 %v1111
        %v1145 = vunpack.c.h.b16 %v1111
        %v1146 = vunpack.c.l.b16 %v1112
        %v1147 = vunpack.c.h.b16 %v1112
        %v1148 = vunpack.c.l.b16 %v1113
        %v1149 = vunpack.c.h.b16 %v1113
        %v1150 = vunpack.c.l.b16 %v1114
        %v1151 = vunpack.c.h.b16 %v1114
        %v1152 = vunpack.c.l.b16 %v1115
        %v1153 = vunpack.c.h.b16 %v1115
        %v1154 = vunpack.c.l.b16 %v1116
        %v1155 = vunpack.c.h.b16 %v1116
        %v1156 = vunpack.c.l.b16 %v1117
        %v1157 = vunpack.c.h.b16 %v1117
        %v1158 = vunpack.c.l.b16 %v1118
        %v1159 = vunpack.c.h.b16 %v1118
        %v1160 = vunpack.c.l.b16 %v1119
        %v1161 = vunpack.c.h.b16 %v1119
        %v1162 = vunpack.c.l.b16 %v1120
        %v1163 = vunpack.c.h.b16 %v1120
        %v1164 = vunpack.c.l.b16 %v1121
        %v1165 = vunpack.c.h.b16 %v1121
        %v1166 = vunpack.c.l.b16 %v1122
        %v1167 = vunpack.c.h.b16 %v1122
        %v1168 = vunpack.c.l.b16 %v1123
        %v1169 = vunpack.c.h.b16 %v1123
        %v1170 = vunpack.c.l.b16 %v1124
        %v1171 = vunpack.c.h.b16 %v1124
        %v1172 = vunpack.c.l.b16 %v1125
        %v1173 = vunpack.c.h.b16 %v1125
        %v1174 = vpack.c.b16 %v1144, %v1142
        %v1175 = vpack.c.b16 %v1145, %v1143
        %v1176 = vpack.c.b16 %v1148, %v1146
        %v1177 = vpack.c.b16 %v1149, %v1147
        %v1178 = vpack.c.b16 %v1152, %v1150
        %v1179 = vpack.c.b16 %v1153, %v1151
        %v1180 = vpack.c.b16 %v1156, %v1154
        %v1181 = vpack.c.b16 %v1157, %v1155
        %v1182 = vpack.c.b16 %v1160, %v1158
        %v1183 = vpack.c.b16 %v1161, %v1159
        %v1184 = vpack.c.b16 %v1164, %v1162
        %v1185 = vpack.c.b16 %v1165, %v1163
        %v1186 = vpack.c.b16 %v1168, %v1166
        %v1187 = vpack.c.b16 %v1169, %v1167
        %v1188 = vpack.c.b16 %v1172, %v1170
        %v1189 = vpack.c.b16 %v1173, %v1171
        %1206 = vmatprep.subr.bf16.mxu0 %v1189
        %1207 = vmatpush1.bf16.msra.mxu0 %v1188
        %1208 = vmatprep.subr.bf16.mxu0 %v1187
        %1209 = vmatpush1.bf16.msra.mxu0 %v1186
        %1210 = vmatprep.subr.bf16.mxu0 %v1185
        %1211 = vmatpush1.bf16.msra.mxu0 %v1184
        %1212 = vmatprep.subr.bf16.mxu0 %v1183
        %1213 = vmatpush1.bf16.msra.mxu0 %v1182
        %1214 = vmatprep.subr.bf16.mxu0 %v1181
        %1215 = vmatpush1.bf16.msra.mxu0 %v1180
        %1216 = vmatprep.subr.bf16.mxu0 %v1179
        %1217 = vmatpush1.bf16.msra.mxu0 %v1178
        %1218 = vmatprep.subr.bf16.mxu0 %v1177
        %1219 = vmatpush1.bf16.msra.mxu0 %v1176
        %1220 = vmatprep.subr.bf16.mxu0 %v1175
        %1221 = vmatpush1.bf16.msra.mxu0 %v1174
        %1222 = vmatprep.subr.bf16.mxu0 0
        %1223 = vmatpush2.bf16.msra.mxu0 0
        %1224 = vmatprep.subr.bf16.mxu0 0
        %1225 = vmatpush2.bf16.msra.mxu0 0
        %1226 = vmatprep.subr.bf16.mxu0 0
        %1227 = vmatpush2.bf16.msra.mxu0 0
        %1228 = vmatprep.subr.bf16.mxu0 0
        %1229 = vmatpush2.bf16.msra.mxu0 0
        %1230 = vmatprep.subr.bf16.mxu0 0
        %1231 = vmatpush2.bf16.msra.mxu0 0
        %1232 = vmatprep.subr.bf16.mxu0 0
        %1233 = vmatpush2.bf16.msra.mxu0 0
        %1234 = vmatprep.subr.bf16.mxu0 0
        %1235 = vmatpush2.bf16.msra.mxu0 0
        %1236 = vmatprep.subr.bf16.mxu0 0
        %1237 = vmatpush2.bf16.msra.mxu0 0
        %1238 = vmatprep.mubr.bf16.mxu0 0
        %1239 = vmatmul.mubr.bf16.gmra.mxu0 %v1102
        %v1240 = vpop.f32.mrf.mxu0
        %v1241 = vadd.f32 0.0, %v1240
        %v1242 = vpop.f32.mrf.mxu0
        %v1243 = vadd.f32 0.0, %v1242
        %v1244 = vpop.f32.mrf.mxu0
        %v1245 = vadd.f32 0.0, %v1244
        %v1246 = vpop.f32.mrf.mxu0
        %v1247 = vadd.f32 0.0, %v1246
        %1248 = vmatprep.mubr.bf16.mxu0 0
        %1249 = vmatmul.mubr.bf16.gmra.mxu0 %v1103
        %v1250 = vpop.f32.mrf.mxu0
        %v1251 = vadd.f32 0.0, %v1250
        %v1252 = vpop.f32.mrf.mxu0
        %v1253 = vadd.f32 0.0, %v1252
        %v1254 = vpop.f32.mrf.mxu0
        %v1255 = vadd.f32 0.0, %v1254
        %v1256 = vpop.f32.mrf.mxu0
        %v1257 = vadd.f32 0.0, %v1256
        %1258 = vmatprep.mubr.bf16.mxu0 0
        %1259 = vmatmul.mubr.bf16.gmra.mxu0 %v1104
        %v1260 = vpop.f32.mrf.mxu0
        %v1261 = vadd.f32 0.0, %v1260
        %v1262 = vpop.f32.mrf.mxu0
        %v1263 = vadd.f32 0.0, %v1262
        %v1264 = vpop.f32.mrf.mxu0
        %v1265 = vadd.f32 0.0, %v1264
        %v1266 = vpop.f32.mrf.mxu0
        %v1267 = vadd.f32 0.0, %v1266
        %1268 = vmatprep.mubr.bf16.mxu0 0
        %1269 = vmatmul.mubr.bf16.gmra.mxu0 %v1105
        %v1270 = vpop.f32.mrf.mxu0
        %v1271 = vadd.f32 0.0, %v1270
        %v1272 = vpop.f32.mrf.mxu0
        %v1273 = vadd.f32 0.0, %v1272
        %v1274 = vpop.f32.mrf.mxu0
        %v1275 = vadd.f32 0.0, %v1274
        %v1276 = vpop.f32.mrf.mxu0
        %v1277 = vadd.f32 0.0, %v1276
        %1278 = vmatprep.mubr.bf16.mxu0 0
        %1279 = vmatmul.mubr.bf16.gmra.mxu0 %v1106
        %v1280 = vpop.f32.mrf.mxu0
        %v1281 = vadd.f32 0.0, %v1280
        %v1282 = vpop.f32.mrf.mxu0
        %v1283 = vadd.f32 0.0, %v1282
        %v1284 = vpop.f32.mrf.mxu0
        %v1285 = vadd.f32 0.0, %v1284
        %v1286 = vpop.f32.mrf.mxu0
        %v1287 = vadd.f32 0.0, %v1286
        %1288 = vmatprep.mubr.bf16.mxu0 0
        %1289 = vmatmul.mubr.bf16.gmra.mxu0 %v1107
        %v1290 = vpop.f32.mrf.mxu0
        %v1291 = vadd.f32 0.0, %v1290
        %v1292 = vpop.f32.mrf.mxu0
        %v1293 = vadd.f32 0.0, %v1292
        %v1294 = vpop.f32.mrf.mxu0
        %v1295 = vadd.f32 0.0, %v1294
        %v1296 = vpop.f32.mrf.mxu0
        %v1297 = vadd.f32 0.0, %v1296
        %1298 = vmatprep.mubr.bf16.mxu0 0
        %1299 = vmatmul.mubr.bf16.gmra.mxu0 %v1108
        %v1300 = vpop.f32.mrf.mxu0
        %v1301 = vadd.f32 0.0, %v1300
        %v1302 = vpop.f32.mrf.mxu0
        %v1303 = vadd.f32 0.0, %v1302
        %v1304 = vpop.f32.mrf.mxu0
        %v1305 = vadd.f32 0.0, %v1304
        %v1306 = vpop.f32.mrf.mxu0
        %v1307 = vadd.f32 0.0, %v1306
        %1308 = vmatprep.mubr.bf16.mxu0 0
        %1309 = vmatmul.mubr.bf16.gmra.mxu0 %v1109
        %v1310 = vpop.f32.mrf.mxu0
        %v1311 = vadd.f32 0.0, %v1310
        %v1312 = vpop.f32.mrf.mxu0
        %v1313 = vadd.f32 0.0, %v1312
        %v1314 = vpop.f32.mrf.mxu0
        %v1315 = vadd.f32 0.0, %v1314
        %v1316 = vpop.f32.mrf.mxu0
        %v1317 = vadd.f32 0.0, %v1316
        %1318 = vdwg.mxu0
        %v1319 = vpack.c.bf16 %v1245, %v1241
        %v1320 = vpack.c.bf16 %v1255, %v1251
        %v1321 = vpack.c.bf16 %v1265, %v1261
        %v1322 = vpack.c.bf16 %v1275, %v1271
        %v1323 = vpack.c.bf16 %v1285, %v1281
        %v1324 = vpack.c.bf16 %v1295, %v1291
        %v1325 = vpack.c.bf16 %v1305, %v1301
        %v1326 = vpack.c.bf16 %v1315, %v1311
        %v1335 = vunpack.c.l.b16 %v1319
        %v1336 = vunpack.c.h.b16 %v1319
        %v1337 = vunpack.c.l.b16 %v1320
        %v1338 = vunpack.c.h.b16 %v1320
        %v1339 = vunpack.c.l.b16 %v1321
        %v1340 = vunpack.c.h.b16 %v1321
        %v1341 = vunpack.c.l.b16 %v1322
        %v1342 = vunpack.c.h.b16 %v1322
        %v1343 = vunpack.c.l.b16 %v1323
        %v1344 = vunpack.c.h.b16 %v1323
        %v1345 = vunpack.c.l.b16 %v1324
        %v1346 = vunpack.c.h.b16 %v1324
        %v1347 = vunpack.c.l.b16 %v1325
        %v1348 = vunpack.c.h.b16 %v1325
        %v1349 = vunpack.c.l.b16 %v1326
        %v1350 = vunpack.c.h.b16 %v1326
        %v1351 = vpack.c.b16 %v1335, %v1335
        %v1352 = vpack.c.b16 %v1336, %v1336
        %v1353 = vpack.c.b16 %v1337, %v1337
        %v1354 = vpack.c.b16 %v1338, %v1338
        %v1355 = vpack.c.b16 %v1339, %v1339
        %v1356 = vpack.c.b16 %v1340, %v1340
        %v1357 = vpack.c.b16 %v1341, %v1341
        %v1358 = vpack.c.b16 %v1342, %v1342
        %v1359 = vpack.c.b16 %v1343, %v1343
        %v1360 = vpack.c.b16 %v1344, %v1344
        %v1361 = vpack.c.b16 %v1345, %v1345
        %v1362 = vpack.c.b16 %v1346, %v1346
        %v1363 = vpack.c.b16 %v1347, %v1347
        %v1364 = vpack.c.b16 %v1348, %v1348
        %v1365 = vpack.c.b16 %v1349, %v1349
        %v1366 = vpack.c.b16 %v1350, %v1350
        %1383 = vst [vmem:[%s332] sm:$0xf] %v1351
        %1384 = vst [vmem:[%s332 + $0x4] sm:$0xf] %v1352
        %1385 = vst [vmem:[%s332 + $0x8] sm:$0xf] %v1353
        %1386 = vst [vmem:[%s332 + $0xc] sm:$0xf] %v1354
        %1387 = vst [vmem:[%s332 + $0x10] sm:$0xf] %v1355
        %1388 = vst [vmem:[%s332 + $0x14] sm:$0xf] %v1356
        %1389 = vst [vmem:[%s332 + $0x18] sm:$0xf] %v1357
        %1390 = vst [vmem:[%s332 + $0x1c] sm:$0xf] %v1358
        %1391 = vst [vmem:[%s332 + $0x20] sm:$0xf] %v1359
        %1392 = vst [vmem:[%s332 + $0x24] sm:$0xf] %v1360
        %1393 = vst [vmem:[%s332 + $0x28] sm:$0xf] %v1361
        %1394 = vst [vmem:[%s332 + $0x2c] sm:$0xf] %v1362
        %1395 = vst [vmem:[%s332 + $0x30] sm:$0xf] %v1363
        %1396 = vst [vmem:[%s332 + $0x34] sm:$0xf] %v1364
        %1397 = vst [vmem:[%s332 + $0x38] sm:$0xf] %v1365
        %1398 = vst [vmem:[%s332 + $0x3c] sm:$0xf] %v1366
        %1399 = vst [vmem:[%s339] sm:$0xff] %v1243
        %1400 = vst [vmem:[%s339 + $0x8] sm:$0xff] %v1247
        %1401 = vst [vmem:[%s339 + $0x10] sm:$0xff] %v1253
        %1402 = vst [vmem:[%s339 + $0x18] sm:$0xff] %v1257
        %1403 = vst [vmem:[%s339 + $0x20] sm:$0xff] %v1263
        %1404 = vst [vmem:[%s339 + $0x28] sm:$0xff] %v1267
        %1405 = vst [vmem:[%s339 + $0x30] sm:$0xff] %v1273
        %1406 = vst [vmem:[%s339 + $0x38] sm:$0xff] %v1277
        %1407 = vst [vmem:[%s339 + $0x40] sm:$0xff] %v1283
        %1408 = vst [vmem:[%s339 + $0x48] sm:$0xff] %v1287
        %1409 = vst [vmem:[%s339 + $0x50] sm:$0xff] %v1293
        %1410 = vst [vmem:[%s339 + $0x58] sm:$0xff] %v1297
        %1411 = vst [vmem:[%s339 + $0x60] sm:$0xff] %v1303
        %1412 = vst [vmem:[%s339 + $0x68] sm:$0xff] %v1307
        %1413 = vst [vmem:[%s339 + $0x70] sm:$0xff] %v1313
        %1414 = vst [vmem:[%s339 + $0x78] sm:$0xff] %v1317
        %s1415 = sand.u32 %s173, 1
        %s1416 = scalar_lea.sflag [#allocation4], %s1415
        %s1417 = sand.u32 %s173, 1
        %s1418 = smul.addr %s1417, 64
        %s1419 = scalar_lea.vmem [#allocation7], %s1418
        %s1420 = sand.u32 %s199, 1
        %s1421 = scalar_lea.sflag [#allocation9], %s1420
        %s1422 = sand.u32 %s199, 1
        %s1423 = smul.addr %s1422, 128
        %s1424 = scalar_lea.vmem [#allocation8], %s1423
        // Predicated region
        $region53: #{tpu_custom_call.1} parent=43 // pred_check
          %p1425 = pneg %p183
        $region54: #{tpu_custom_call.1} parent=43 // pred_check_branch
          %1427 = sbr.rel (%p1425) target = $region56
        $region55: #{tpu_custom_call.1} parent=43 // pred_region
          %s1428 = smul.u32 16, %s29
          %s1430 = ssub.s32 1024, 1024
          %1431 = vsyncadd %s1416, %s1430
          %s1432 = smul.addr %s1428, 64
          %s1433 = scalar_lea.hbm %s6, %s1432
          %s1434 = sshll.u32 %s1419, 4
          %s1435 = int_to_ptr.vmem [resolvable:$true] %s1434
          %1440 = dma.vmem_to_hbm [thread:$0]  %s1435, 1024, %s1433, %s1416, 64, 64, 4
        $region56: #{tpu_custom_call.1} parent=43 // pred_fallthru
          _
        // Predicated region
        $region57: #{tpu_custom_call.1} parent=43 // pred_check
          %p1441 = pneg %p209
        $region58: #{tpu_custom_call.1} parent=43 // pred_check_branch
          %1443 = sbr.rel (%p1441) target = $region60
        $region59: #{tpu_custom_call.1} parent=43 // pred_region
          %s1444 = smul.u32 16, %s29
          %s1446 = ssub.s32 2048, 2048
          %1447 = vsyncadd %s1421, %s1446
          %s1448 = smul.addr %s1444, 128
          %s1449 = scalar_lea.hbm %s7, %s1448
          %s1450 = sshll.u32 %s1424, 4
          %s1451 = int_to_ptr.vmem [resolvable:$true] %s1450
          %1456 = dma.vmem_to_hbm [thread:$0]  %s1451, 2048, %s1449, %s1421, 128, 128, 8
        $region60: #{tpu_custom_call.1} parent=43 // pred_fallthru
          _
      $region44: #{tpu_custom_call.1} parent=5 // pred_fallthru
        _
      %p1457 = scmp.le.s32.totalorder 2, %s24
      // Predicated region
      $region61: #{tpu_custom_call.1} parent=5 // pred_check
        %p1458 = pneg %p1457
      $region62: #{tpu_custom_call.1} parent=5 // pred_check_branch
        %1460 = sbr.rel (%p1458) target = $region64
      $region63: #{tpu_custom_call.1} parent=5 // pred_region
        %s1461 = ssub.s32 %s24, 2
        // Predicated region
        $region65: #{tpu_custom_call.1} parent=63 // pred_check
          %p1462 = pneg %p189
        $region66: #{tpu_custom_call.1} parent=63 // pred_check_branch
          %1464 = sbr.rel (%p1462) target = $region68
        $region67: #{tpu_custom_call.1} parent=63 // pred_region
          %s1465 = sand.u32 %s174, 1
          %s1466 = scalar_lea.sflag [#allocation4], %s1465
          %s1467 = sand.u32 %s174, 1
          %s1468 = smul.addr %s1467, 64
          %s1469 = scalar_lea.vmem [#allocation7], %s1468
          %1470 = dma.done %s1466, 1024
        $region68: #{tpu_custom_call.1} parent=63 // pred_fallthru
          _
        // Predicated region
        $region69: #{tpu_custom_call.1} parent=63 // pred_check
          %p1471 = pneg %p215
        $region70: #{tpu_custom_call.1} parent=63 // pred_check_branch
          %1473 = sbr.rel (%p1471) target = $region72
        $region71: #{tpu_custom_call.1} parent=63 // pred_region
          %s1474 = sand.u32 %s200, 1
          %s1475 = scalar_lea.sflag [#allocation9], %s1474
          %s1476 = sand.u32 %s200, 1
          %s1477 = smul.addr %s1476, 128
          %s1478 = scalar_lea.vmem [#allocation8], %s1477
          %1479 = dma.done %s1475, 2048
        $region72: #{tpu_custom_call.1} parent=63 // pred_fallthru
          _
      $region64: #{tpu_custom_call.1} parent=5 // pred_fallthru
        _
    $region6: #{tpu_custom_call.1} parent=1 // loop_footer
      %s28 = sadd.s32 1, %s24
    $region7: #{tpu_custom_call.1} parent=1 // loop_footer_branch
      %23 = sbr.rel target = $region3
    $region8: #{tpu_custom_call.1} parent=1 // loop_exit
      _
    %1480 = vsyncpa [#allocation3], 1
    %s1481 = scalar_lea.sflag [#allocation3], 1
    %1482 = vsyncpa %s1481, 1
    %1483 = vsyncpa [#allocation6], 1
    %1484 = vsyncpa [#allocation4], 1
    %s1485 = scalar_lea.sflag [#allocation4], 1
    %1486 = vsyncpa %s1485, 1
    %1487 = vsyncpa [#allocation9], 1
    %s1488 = scalar_lea.sflag [#allocation9], 1
    %1489 = vsyncpa %s1488, 1

</llo_original>
